<compile_context>
chip_gen: v7x
topology: tpu7x:2x2x1
jax: 0.10.0
libtpu: 0.0.40
codegen_flags: <defaults>
</compile_context>

<pallas_src>
import jax
import jax.numpy as jnp
from jax.experimental import pallas as pl
from jax.experimental.pallas import tpu as pltpu


def _round_up(n, m):
    return ((n + m - 1) // m) * m


def _prelu(h, alpha):
    # nn.PReLU() default: single learnable scalar alpha per PReLU module.
    return jnp.where(h >= 0, h, alpha * h)


def _mlp_kernel(x_ref,
                w1_ref, b1_ref,
                w2_ref, b2_ref,
                w3_ref, b3_ref,
                w4_ref, b4_ref,
                w5_ref, b5_ref,
                alpha_ref,
                out_ref):
    # Input arrives f32; cast to bf16 in-kernel (VPU) instead of a separate
    # wrapper-side pad/cast pass over HBM.
    x = x_ref[...].astype(jnp.bfloat16)

    # fc1: Linear (+ folded BN) + PReLU.  bf16 MXU operands, f32 accumulate.
    h = jnp.dot(x, w1_ref[...],
                preferred_element_type=jnp.float32) + b1_ref[...]
    h = _prelu(h, alpha_ref[0])

    # fc2: (Dropout = id) Linear (+ folded BN) + PReLU.
    h = jnp.dot(h.astype(jnp.bfloat16), w2_ref[...],
                preferred_element_type=jnp.float32) + b2_ref[...]
    h = _prelu(h, alpha_ref[1])

    # embedding: (Dropout = id) Linear, then embedding_norm (folded BN) + PReLU.
    h = jnp.dot(h.astype(jnp.bfloat16), w3_ref[...],
                preferred_element_type=jnp.float32) + b3_ref[...]
    h = _prelu(h, alpha_ref[2])

    # regress_head: Linear (+ folded BN) + PReLU.
    h = jnp.dot(h.astype(jnp.bfloat16), w4_ref[...],
                preferred_element_type=jnp.float32) + b4_ref[...]
    h = _prelu(h, alpha_ref[3])

    # Final Linear(R, 1) as broadcast-multiply + lane reduce (f32); the output
    # block is (tb, 1), so only 4 useful bytes/row are written back to HBM.
    out_ref[...] = (jnp.sum(h * w5_ref[...], axis=-1, keepdims=True)
                    + b5_ref[...])


def pretrain_embedding_net_forward(x, folded_params, *, block_b=1024):
    """Fused forward pass, batch-tiled.  Returns (B, 1) float32."""
    (w1, b1, w2, b2, w3, b3, w4, b4, w5, b5, alphas) = folded_params

    B, F = x.shape
    assert w1.shape[0] == F, (w1.shape, F)

    # Batch tile: large (amortizes the ~0.35 us/step grid overhead), but capped
    # at ceil(B/2) rounded to 8 sublanes so there are always >= 2 grid steps
    # (lets the "parallel" axis shard across both v7x TensorCores).
    half = _round_up(pl.cdiv(max(B, 1), 2), 8)
    tb = max(8, min(block_b, half))
    B_pad = _round_up(B, tb)
    num_tiles = B_pad // tb

    # Only pad rows when the batch does not divide the tile (no F padding,
    # no dtype-cast pass in the wrapper).
    x_p = x if B_pad == B else jnp.pad(x, ((0, B_pad - B), (0, 0)))

    def batch_map(i):
        return (i, 0)

    def const_map(i):
        return (0, 0)

    # Weights/biases: full-array blocks with constant index_maps -> resident
    # in VMEM across grid steps (no re-DMA).
    weight_specs = []
    for w, b in ((w1, b1), (w2, b2), (w3, b3), (w4, b4), (w5, b5)):
        weight_specs.append(pl.BlockSpec(w.shape, const_map))
        weight_specs.append(pl.BlockSpec(b.shape, const_map))

    in_specs = ([pl.BlockSpec((tb, F), batch_map)]       # last dim == full dim
                + weight_specs
                + [pl.BlockSpec(memory_space=pltpu.MemorySpace.SMEM)])
    out_specs = pl.BlockSpec((tb, 1), batch_map)          # last dim == full dim

    out = pl.pallas_call(
        _mlp_kernel,
        out_shape=jax.ShapeDtypeStruct((B_pad, 1), jnp.float32),
        grid=(num_tiles,),
        in_specs=in_specs,
        out_specs=out_specs,
        compiler_params=pltpu.CompilerParams(
            dimension_semantics=("parallel",),
            vmem_limit_bytes=32 * 1024 * 1024),
    )(x_p, w1, b1, w2, b2, w3, b3, w4, b4, w5, b5, alphas)

    return out[:B, :]


def make_raw_params(key, input_features, out_channels, regress_head_channels):
    """Deterministic synthetic PyTorch-style parameters (unfused, f32)."""
    dims = [
        (input_features, out_channels * 4),       # fc1 linear
        (out_channels * 4, out_channels * 2),     # fc2 linear
        (out_channels * 2, out_channels),         # embedding linear
        (out_channels, regress_head_channels),    # regress_head linear 1
        (regress_head_channels, 1),               # regress_head linear 2
    ]
    keys = jax.random.split(key, 64)
    ki = 0

    def nxt():
        nonlocal ki
        k = keys[ki]
        ki += 1
        return k

    linears, bns = [], []
    for li, (fan_in, fan_out) in enumerate(dims):
        # Weight stored pre-transposed to (in, out): y = x @ W + b.
        w = jax.random.normal(nxt(), (fan_in, fan_out), jnp.float32) / jnp.sqrt(fan_in)
        b = 0.01 * jax.random.normal(nxt(), (fan_out,), jnp.float32)
        linears.append((w, b))
        if li < 4:   # layers 1..4 are followed by a BatchNorm1d
            gamma = 1.0 + 0.1 * jax.random.normal(nxt(), (fan_out,), jnp.float32)
            beta = 0.1 * jax.random.normal(nxt(), (fan_out,), jnp.float32)
            mean = 0.05 * jax.random.normal(nxt(), (fan_out,), jnp.float32)
            var = 1.0 + 0.1 * jnp.abs(jax.random.normal(nxt(), (fan_out,), jnp.float32))
            bns.append((gamma, beta, mean, var))
    alphas = jnp.full((4,), 0.25, dtype=jnp.float32)   # PReLU default init
    return linears, bns, alphas


def fold_params(raw, eps=1e-5):
    """Fold eval-mode BN into weights/biases; cast matmul weights to bf16.

    The final Linear(R, 1) weight is stored transposed as (1, R) f32 so the
    kernel can use a broadcast-multiply + lane reduce and a (tb, 1) output.
    """
    linears, bns, alphas = raw
    out = []
    for li, (w, b) in enumerate(linears):
        if li < 4:
            gamma, beta, mean, var = bns[li]
            scale = gamma / jnp.sqrt(var + eps)
            shift = beta - mean * scale
            w_eff = (w * scale[None, :]).astype(jnp.bfloat16)
            b_eff = (b * scale + shift).reshape(1, -1).astype(jnp.float32)
        else:
            w_eff = w.reshape(1, -1).astype(jnp.float32)      # (R,1) -> (1,R) f32
            b_eff = b.reshape(1, -1).astype(jnp.float32)      # (1,1)
        out.append(w_eff)
        out.append(b_eff)
    out.append(alphas.astype(jnp.float32))
    return tuple(out)


def reference_forward(x, folded_params):
    """Pure-JAX reference mirroring the kernel math (bf16 MXU, f32 accumulate)."""
    (w1, b1, w2, b2, w3, b3, w4, b4, w5, b5, alphas) = folded_params

    def prelu(h, a):
        return jnp.where(h >= 0, h, a * h)

    h = jnp.dot(x.astype(jnp.bfloat16), w1, preferred_element_type=jnp.float32) + b1
    h = prelu(h, alphas[0])
    h = jnp.dot(h.astype(jnp.bfloat16), w2, preferred_element_type=jnp.float32) + b2
    h = prelu(h, alphas[1])
    h = jnp.dot(h.astype(jnp.bfloat16), w3, preferred_element_type=jnp.float32) + b3
    h = prelu(h, alphas[2])
    h = jnp.dot(h.astype(jnp.bfloat16), w4, preferred_element_type=jnp.float32) + b4
    h = prelu(h, alphas[3])
    return jnp.sum(h * w5, axis=-1, keepdims=True) + b5


def reference_forward_f32(x, raw, eps=1e-5):
    """Unfused f32 reference of the PyTorch eval-mode forward."""
    linears, bns, alphas = raw
    h = x
    for li, (w, b) in enumerate(linears):
        h = h @ w + b
        if li < 4:
            gamma, beta, mean, var = bns[li]
            h = (h - mean) / jnp.sqrt(var + eps) * gamma + beta
            h = jnp.where(h >= 0, h, alphas[li] * h)
    return h


if __name__ == "__main__":
    # Small shapes consistent with the module's MLP structure
    # (module defaults are F=1000, C=128, R=16 — scaled down, ratios preserved).
    B = 512                    # batch -> tb=256, 2 grid steps
    INPUT_FEATURES = 200       # non-multiple of 128 -> exercises unaligned F
    OUT_CHANNELS = 32          # fc1 -> 128, fc2 -> 64, embedding -> 32
    REGRESS_HEAD_CHANNELS = 16

    key = jax.random.PRNGKey(0)
    kx, kp = jax.random.split(key)
    x = jax.random.normal(kx, (B, INPUT_FEATURES), jnp.float32)

    raw = make_raw_params(kp, INPUT_FEATURES, OUT_CHANNELS, REGRESS_HEAD_CHANNELS)
    params = fold_params(raw)

    out = pretrain_embedding_net_forward(x, params)
    out = jax.block_until_ready(out)
    assert out.shape == (B, 1), out.shape

    # Tight check against a reference using the same folded bf16 weights.
    ref = reference_forward(x, params)
    assert jnp.allclose(out, ref, atol=1e-2, rtol=1e-2), \
        float(jnp.max(jnp.abs(out - ref)))

    # Looser check against the unfused f32 PyTorch-style eval math.
    ref_f32 = reference_forward_f32(x, raw)
    assert jnp.allclose(out, ref_f32, atol=1.5e-1, rtol=1e-1), \
        float(jnp.max(jnp.abs(out - ref_f32)))

    print("KERNEL_OK")
</pallas_src>

<mosaic_0001>
module attributes {stable_mosaic.version = 11 : i64} {
  func.func @_mlp_kernel(%arg0: i32, %arg1: memref<256x200xf32, #tpu.memory_space<vmem>>, %arg2: memref<200x128xbf16, #tpu.memory_space<vmem>>, %arg3: memref<1x128xf32, #tpu.memory_space<vmem>>, %arg4: memref<128x64xbf16, #tpu.memory_space<vmem>>, %arg5: memref<1x64xf32, #tpu.memory_space<vmem>>, %arg6: memref<64x32xbf16, #tpu.memory_space<vmem>>, %arg7: memref<1x32xf32, #tpu.memory_space<vmem>>, %arg8: memref<32x16xbf16, #tpu.memory_space<vmem>>, %arg9: memref<1x16xf32, #tpu.memory_space<vmem>>, %arg10: memref<1x16xf32, #tpu.memory_space<vmem>>, %arg11: memref<1x1xf32, #tpu.memory_space<vmem>>, %arg12: memref<4xf32, #tpu.memory_space<smem>>, %arg13: memref<256x1xf32, #tpu.memory_space<vmem>>) attributes {dimension_semantics = [#tpu.dimension_semantics<parallel>], iteration_bounds = array<i64: 2>, scalar_prefetch = 0 : i64, scratch_operands = 0 : i64, tpu.core_type = #tpu.core_type<tc>, window_params = [{transform_indices = @transform_0, window_bounds = array<i64: 256, 200>}, {pipeline_mode = #tpu.pipeline_mode<synchronous>, transform_indices = @transform_1, window_bounds = array<i64: 200, 128>}, {pipeline_mode = #tpu.pipeline_mode<synchronous>, transform_indices = @transform_2, window_bounds = array<i64: 1, 128>}, {pipeline_mode = #tpu.pipeline_mode<synchronous>, transform_indices = @transform_3, window_bounds = array<i64: 128, 64>}, {pipeline_mode = #tpu.pipeline_mode<synchronous>, transform_indices = @transform_4, window_bounds = array<i64: 1, 64>}, {pipeline_mode = #tpu.pipeline_mode<synchronous>, transform_indices = @transform_5, window_bounds = array<i64: 64, 32>}, {pipeline_mode = #tpu.pipeline_mode<synchronous>, transform_indices = @transform_6, window_bounds = array<i64: 1, 32>}, {pipeline_mode = #tpu.pipeline_mode<synchronous>, transform_indices = @transform_7, window_bounds = array<i64: 32, 16>}, {pipeline_mode = #tpu.pipeline_mode<synchronous>, transform_indices = @transform_8, window_bounds = array<i64: 1, 16>}, {pipeline_mode = #tpu.pipeline_mode<synchronous>, transform_indices = @transform_9, window_bounds = array<i64: 1, 16>}, {pipeline_mode = #tpu.pipeline_mode<synchronous>, transform_indices = @transform_10, window_bounds = array<i64: 1, 1>}, {transform_indices = @transform_11, window_bounds = array<i64: 4>}, {transform_indices = @transform_12, window_bounds = array<i64: 256, 1>}]} {
    %c0 = arith.constant 0 : index
    %c0_0 = arith.constant 0 : index
    %0 = vector.load %arg1[%c0, %c0_0] : memref<256x200xf32, #tpu.memory_space<vmem>>, vector<256x200xf32>
    %1 = arith.truncf %0 : vector<256x200xf32> to vector<256x200xbf16>
    %c0_1 = arith.constant 0 : index
    %c0_2 = arith.constant 0 : index
    %2 = vector.load %arg2[%c0_1, %c0_2] : memref<200x128xbf16, #tpu.memory_space<vmem>>, vector<200x128xbf16>
    %cst = arith.constant dense<0.000000e+00> : vector<256x128xf32>
    %3 = tpu.matmul %1, %2, %cst {dimension_numbers = #tpu.dot_dimension_numbers<[1], [0], [0], [1], [0, 0, 1, 1], [], []>} : vector<256x200xbf16>, vector<200x128xbf16>, vector<256x128xf32> -> vector<256x128xf32>
    %c0_3 = arith.constant 0 : index
    %c0_4 = arith.constant 0 : index
    %4 = vector.load %arg3[%c0_3, %c0_4] : memref<1x128xf32, #tpu.memory_space<vmem>>, vector<1x128xf32>
    %5 = vector.broadcast %4 : vector<1x128xf32> to vector<256x128xf32>
    %6 = arith.addf %3, %5 : vector<256x128xf32>
    %c0_5 = arith.constant 0 : index
    %7 = memref.load %arg12[%c0_5] : memref<4xf32, #tpu.memory_space<smem>>
    %cst_6 = arith.constant 0.000000e+00 : f32
    %8 = vector.broadcast %cst_6 : f32 to vector<256x128xf32>
    %9 = arith.cmpf oge, %6, %8 : vector<256x128xf32>
    %10 = vector.broadcast %7 : f32 to vector<256x128xf32>
    %11 = arith.mulf %10, %6 : vector<256x128xf32>
    %12 = arith.select %9, %6, %11 : vector<256x128xi1>, vector<256x128xf32>
    %13 = arith.truncf %12 : vector<256x128xf32> to vector<256x128xbf16>
    %c0_7 = arith.constant 0 : index
    %c0_8 = arith.constant 0 : index
    %14 = vector.load %arg4[%c0_7, %c0_8] : memref<128x64xbf16, #tpu.memory_space<vmem>>, vector<128x64xbf16>
    %cst_9 = arith.constant dense<0.000000e+00> : vector<256x64xf32>
    %15 = tpu.matmul %13, %14, %cst_9 {dimension_numbers = #tpu.dot_dimension_numbers<[1], [0], [0], [1], [0, 0, 1, 1], [], []>} : vector<256x128xbf16>, vector<128x64xbf16>, vector<256x64xf32> -> vector<256x64xf32>
    %c0_10 = arith.constant 0 : index
    %c0_11 = arith.constant 0 : index
    %16 = vector.load %arg5[%c0_10, %c0_11] : memref<1x64xf32, #tpu.memory_space<vmem>>, vector<1x64xf32>
    %17 = vector.broadcast %16 : vector<1x64xf32> to vector<256x64xf32>
    %18 = arith.addf %15, %17 : vector<256x64xf32>
    %c1 = arith.constant 1 : index
    %19 = memref.load %arg12[%c1] : memref<4xf32, #tpu.memory_space<smem>>
    %cst_12 = arith.constant 0.000000e+00 : f32
    %20 = vector.broadcast %cst_12 : f32 to vector<256x64xf32>
    %21 = arith.cmpf oge, %18, %20 : vector<256x64xf32>
    %22 = vector.broadcast %19 : f32 to vector<256x64xf32>
    %23 = arith.mulf %22, %18 : vector<256x64xf32>
    %24 = arith.select %21, %18, %23 : vector<256x64xi1>, vector<256x64xf32>
    %25 = arith.truncf %24 : vector<256x64xf32> to vector<256x64xbf16>
    %c0_13 = arith.constant 0 : index
    %c0_14 = arith.constant 0 : index
    %26 = vector.load %arg6[%c0_13, %c0_14] : memref<64x32xbf16, #tpu.memory_space<vmem>>, vector<64x32xbf16>
    %cst_15 = arith.constant dense<0.000000e+00> : vector<256x32xf32>
    %27 = tpu.matmul %25, %26, %cst_15 {dimension_numbers = #tpu.dot_dimension_numbers<[1], [0], [0], [1], [0, 0, 1, 1], [], []>} : vector<256x64xbf16>, vector<64x32xbf16>, vector<256x32xf32> -> vector<256x32xf32>
    %c0_16 = arith.constant 0 : index
    %c0_17 = arith.constant 0 : index
    %28 = vector.load %arg7[%c0_16, %c0_17] : memref<1x32xf32, #tpu.memory_space<vmem>>, vector<1x32xf32>
    %29 = vector.broadcast %28 : vector<1x32xf32> to vector<256x32xf32>
    %30 = arith.addf %27, %29 : vector<256x32xf32>
    %c2 = arith.constant 2 : index
    %31 = memref.load %arg12[%c2] : memref<4xf32, #tpu.memory_space<smem>>
    %cst_18 = arith.constant 0.000000e+00 : f32
    %32 = vector.broadcast %cst_18 : f32 to vector<256x32xf32>
    %33 = arith.cmpf oge, %30, %32 : vector<256x32xf32>
    %34 = vector.broadcast %31 : f32 to vector<256x32xf32>
    %35 = arith.mulf %34, %30 : vector<256x32xf32>
    %36 = arith.select %33, %30, %35 : vector<256x32xi1>, vector<256x32xf32>
    %37 = arith.truncf %36 : vector<256x32xf32> to vector<256x32xbf16>
    %c0_19 = arith.constant 0 : index
    %c0_20 = arith.constant 0 : index
    %38 = vector.load %arg8[%c0_19, %c0_20] : memref<32x16xbf16, #tpu.memory_space<vmem>>, vector<32x16xbf16>
    %cst_21 = arith.constant dense<0.000000e+00> : vector<256x16xf32>
    %39 = tpu.matmul %37, %38, %cst_21 {dimension_numbers = #tpu.dot_dimension_numbers<[1], [0], [0], [1], [0, 0, 1, 1], [], []>} : vector<256x32xbf16>, vector<32x16xbf16>, vector<256x16xf32> -> vector<256x16xf32>
    %c0_22 = arith.constant 0 : index
    %c0_23 = arith.constant 0 : index
    %40 = vector.load %arg9[%c0_22, %c0_23] : memref<1x16xf32, #tpu.memory_space<vmem>>, vector<1x16xf32>
    %41 = vector.broadcast %40 : vector<1x16xf32> to vector<256x16xf32>
    %42 = arith.addf %39, %41 : vector<256x16xf32>
    %c3 = arith.constant 3 : index
    %43 = memref.load %arg12[%c3] : memref<4xf32, #tpu.memory_space<smem>>
    %cst_24 = arith.constant 0.000000e+00 : f32
    %44 = vector.broadcast %cst_24 : f32 to vector<256x16xf32>
    %45 = arith.cmpf oge, %42, %44 : vector<256x16xf32>
    %46 = vector.broadcast %43 : f32 to vector<256x16xf32>
    %47 = arith.mulf %46, %42 : vector<256x16xf32>
    %48 = arith.select %45, %42, %47 : vector<256x16xi1>, vector<256x16xf32>
    %c0_25 = arith.constant 0 : index
    %c0_26 = arith.constant 0 : index
    %49 = vector.load %arg10[%c0_25, %c0_26] : memref<1x16xf32, #tpu.memory_space<vmem>>, vector<1x16xf32>
    %50 = vector.broadcast %49 : vector<1x16xf32> to vector<256x16xf32>
    %51 = arith.mulf %48, %50 : vector<256x16xf32>
    %cst_27 = arith.constant dense<0.000000e+00> : vector<256xf32>
    %52 = vector.multi_reduction <add>, %51, %cst_27 [1] : vector<256x16xf32> to vector<256xf32>
    %53 = vector.shape_cast %52 : vector<256xf32> to vector<256x1xf32>
    %c0_28 = arith.constant 0 : index
    %c0_29 = arith.constant 0 : index
    %54 = vector.load %arg11[%c0_28, %c0_29] : memref<1x1xf32, #tpu.memory_space<vmem>>, vector<1x1xf32>
    %55 = vector.broadcast %54 : vector<1x1xf32> to vector<256x1xf32>
    %56 = arith.addf %53, %55 : vector<256x1xf32>
    %c0_30 = arith.constant 0 : index
    %c0_31 = arith.constant 0 : index
    %57 = vector.load %arg13[%c0_30, %c0_31] : memref<256x1xf32, #tpu.memory_space<vmem>>, vector<256x1xf32>
    tpu.vector_store %arg13[%c0_30, %c0_31], %56 {strides = array<i32>} : memref<256x1xf32, #tpu.memory_space<vmem>>, vector<256x1xf32>,
    return
  }
  func.func @transform_0(%arg0: i32) -> (i32, i32) {
    %c0_i32 = arith.constant 0 : i32
    %c0_i32_0 = arith.constant 0 : i32
    return %arg0, %c0_i32 : i32, i32
  }
  func.func @transform_1(%arg0: i32) -> (i32, i32) {
    %c0_i32 = arith.constant 0 : i32
    %c0_i32_0 = arith.constant 0 : i32
    %c0_i32_1 = arith.constant 0 : i32
    return %c0_i32, %c0_i32_0 : i32, i32
  }
  func.func @transform_2(%arg0: i32) -> (i32, i32) {
    %c0_i32 = arith.constant 0 : i32
    %c0_i32_0 = arith.constant 0 : i32
    %c0_i32_1 = arith.constant 0 : i32
    return %c0_i32, %c0_i32_0 : i32, i32
  }
  func.func @transform_3(%arg0: i32) -> (i32, i32) {
    %c0_i32 = arith.constant 0 : i32
    %c0_i32_0 = arith.constant 0 : i32
    %c0_i32_1 = arith.constant 0 : i32
    return %c0_i32, %c0_i32_0 : i32, i32
  }
  func.func @transform_4(%arg0: i32) -> (i32, i32) {
    %c0_i32 = arith.constant 0 : i32
    %c0_i32_0 = arith.constant 0 : i32
    %c0_i32_1 = arith.constant 0 : i32
    return %c0_i32, %c0_i32_0 : i32, i32
  }
  func.func @transform_5(%arg0: i32) -> (i32, i32) {
    %c0_i32 = arith.constant 0 : i32
    %c0_i32_0 = arith.constant 0 : i32
    %c0_i32_1 = arith.constant 0 : i32
    return %c0_i32, %c0_i32_0 : i32, i32
  }
  func.func @transform_6(%arg0: i32) -> (i32, i32) {
    %c0_i32 = arith.constant 0 : i32
    %c0_i32_0 = arith.constant 0 : i32
    %c0_i32_1 = arith.constant 0 : i32
    return %c0_i32, %c0_i32_0 : i32, i32
  }
  func.func @transform_7(%arg0: i32) -> (i32, i32) {
    %c0_i32 = arith.constant 0 : i32
    %c0_i32_0 = arith.constant 0 : i32
    %c0_i32_1 = arith.constant 0 : i32
    return %c0_i32, %c0_i32_0 : i32, i32
  }
  func.func @transform_8(%arg0: i32) -> (i32, i32) {
    %c0_i32 = arith.constant 0 : i32
    %c0_i32_0 = arith.constant 0 : i32
    %c0_i32_1 = arith.constant 0 : i32
    return %c0_i32, %c0_i32_0 : i32, i32
  }
  func.func @transform_9(%arg0: i32) -> (i32, i32) {
    %c0_i32 = arith.constant 0 : i32
    %c0_i32_0 = arith.constant 0 : i32
    %c0_i32_1 = arith.constant 0 : i32
    return %c0_i32, %c0_i32_0 : i32, i32
  }
  func.func @transform_10(%arg0: i32) -> (i32, i32) {
    %c0_i32 = arith.constant 0 : i32
    %c0_i32_0 = arith.constant 0 : i32
    %c0_i32_1 = arith.constant 0 : i32
    return %c0_i32, %c0_i32_0 : i32, i32
  }
  func.func @transform_11(%arg0: i32) -> i32 {
    %c0_i32 = arith.constant 0 : i32
    %c0_i32_0 = arith.constant 0 : i32
    return %c0_i32 : i32
  }
  func.func @transform_12(%arg0: i32) -> (i32, i32) {
    %c0_i32 = arith.constant 0 : i32
    %c0_i32_0 = arith.constant 0 : i32
    return %arg0, %c0_i32 : i32, i32
  }
}

</mosaic_0001>

<llo_original>
// kernel: tpu_custom_call.1
$region0: #{tpu_custom_call.1}
  #allocation0 [shape = 'u32[]', space=smem, size = 0x4, offset = 0x4, fixed_abs, tag = 'smem constant byte address 0x4 - core index']
  #allocation1 [shape = 'u32[144,128]{1,0:T(1,128)}', space=vmem, size = 0x12000, scoped, tag = 'internal scratch']
  #allocation2 [shape = 'f32[1,1]{1,0:T(1,128)S(1)}', space=vmem, size = 0x200, scoped, tag = 'scoped memory for tpu_custom_call.1']
  %s0 = inlined_call_operand.vmem [shape: f32[512,200], index: 0, kind: input, shape index: {}]
  %s1 = inlined_call_operand.vmem [shape: bf16[200,128], index: 1, kind: input, shape index: {}]
  %s2 = inlined_call_operand.vmem [shape: f32[1,128], index: 2, kind: input, shape index: {}]
  %s3 = inlined_call_operand.vmem [shape: bf16[128,64], index: 3, kind: input, shape index: {}]
  %s4 = inlined_call_operand.vmem [shape: f32[1,64], index: 4, kind: input, shape index: {}]
  %s5 = inlined_call_operand.vmem [shape: bf16[64,32], index: 5, kind: input, shape index: {}]
  %s6 = inlined_call_operand.vmem [shape: f32[1,32], index: 6, kind: input, shape index: {}]
  %s7 = inlined_call_operand.vmem [shape: bf16[32,16], index: 7, kind: input, shape index: {}]
  %s8 = inlined_call_operand.vmem [shape: f32[1,16], index: 8, kind: input, shape index: {}]
  %s9 = inlined_call_operand.vmem [shape: f32[1,16], index: 9, kind: input, shape index: {}]
  %s10 = inlined_call_operand.<no memory space> [shape: f32[1,1], index: 10, kind: input, shape index: {}]
  %s11 = inlined_call_operand.vmem [shape: f32[4], index: 11, kind: input, shape index: {}]
  %s12 = inlined_call_operand.vmem [shape: f32[512,1], index: 12, kind: output, shape index: {}]
  %s13 = sld [smem:[#allocation0]]
  $region85: #{tpu_custom_call.1} parent=0
    _
  %s15 = ssub.s32 1, %s13
  %s16 = scalar_select 0, %s15, %s13
  %v17 = vstv %s10
  %18 = vst [vmem:[#allocation2] sm:$0x1] %v17
  $region1: #{tpu_custom_call.1} parent=0
    #allocation3 [shape = 'u8[512]{0}', space=smem, size = 0x200, scoped, tag = 'input window, operand 11, single buffered']
    #allocation4 [shape = 's32[2]{0}', space=sflag, size = 0x8, scoped, tag = 'scoped memory for tpu_custom_call.1']
    %19 = vsyncpa [#allocation4], 0
    loop: start=0, step=1, limit=4
    $region2: #{tpu_custom_call.1} parent=1 // loop_pre_header
      _
    $region3: #{tpu_custom_call.1} parent=1 // loop_header
      %s21 = sphi 0, %s25
      %p22 = scmp.ge.s32.totalorder %s21, 4
      %s31 = sphi 0, %s33
      %s34 = sphi 0, %s31
      %s35 = sphi 0, %s34
      %s51 = sphi 0, %s35
      %s55 = sphi 0, %s55
      %s57 = sphi 0, %s55
      %s58 = sphi 0, %s57
      %s72 = sphi 0, %s58
      %s76 = sphi 0, %s76
      %s78 = sphi 0, %s76
      %s79 = sphi 0, %s78
      %s93 = sphi 0, %s79
      %s97 = sphi 0, %s97
      %s99 = sphi 0, %s97
      %s100 = sphi 0, %s99
      %s114 = sphi 0, %s100
      %s118 = sphi 0, %s118
      %s120 = sphi 0, %s118
      %s121 = sphi 0, %s120
      %s135 = sphi 0, %s121
      %s139 = sphi 0, %s139
      %s141 = sphi 0, %s139
      %s142 = sphi 0, %s141
      %s156 = sphi 0, %s142
      %s160 = sphi 0, %s160
      %s162 = sphi 0, %s160
      %s163 = sphi 0, %s162
      %s177 = sphi 0, %s163
      %s181 = sphi 0, %s181
      %s183 = sphi 0, %s181
      %s184 = sphi 0, %s183
      %s198 = sphi 0, %s184
      %s202 = sphi 0, %s202
      %s204 = sphi 0, %s202
      %s205 = sphi 0, %s204
      %s219 = sphi 0, %s205
      %s223 = sphi 0, %s223
      %s225 = sphi 0, %s223
      %s226 = sphi 0, %s225
      %s240 = sphi 0, %s226
      %s244 = sphi 0, %s244
      %s246 = sphi 0, %s244
      %s247 = sphi 0, %s246
      %s261 = sphi 0, %s247
      %s265 = sphi 0, %s265
      %s267 = sphi 0, %s265
      %s268 = sphi 0, %s267
      %s282 = sphi 0, %s268
      %s288 = sphi 0, %s290
      %s291 = sphi 0, %s288
      %s292 = sphi 0, %s291
      %s308 = sphi 0, %s292
    $region4: #{tpu_custom_call.1} parent=1 // loop_header_branch
      %24 = sbr.rel (%p22) target = $region8
    $region5: #{tpu_custom_call.1} parent=1 // loop_body
      %s26 = ssub.s32 %s21, 1
      %s27 = ssub.s32 %s21, 2
      %s28 = sadd.s32 %s21, 1
      %s29 = ssub.s32 %s21, %s28
      %p30 = scmp.eq.s32.totalorder %s29, 0
      %s32 = sadd.s32 %s31, 1
      %s33 = scalar_select %p30, %s31, %s32
      %p36 = pneg %p30
      %p37 = scmp.eq.s32.totalorder %s21, 1
      %p38 = por %p36, %p37
      %p39 = scmp.ne.s32.totalorder %s31, %s34
      %p40 = scmp.eq.s32.totalorder %s21, 0
      %p41 = por %p39, %p40
      %p42 = scmp.ne.s32.totalorder %s31, %s34
      %p43 = scmp.eq.s32.totalorder %s26, 1
      %p44 = por %p42, %p43
      %p45 = scmp.ne.s32.totalorder %s34, %s35
      %p46 = scmp.eq.s32.totalorder %s26, 0
      %p47 = por %p45, %p46
      %p48 = scmp.ne.s32.totalorder %s34, %s35
      %p49 = scmp.eq.s32.totalorder %s27, 1
      %p50 = por %p48, %p49
      %p52 = scmp.ne.s32.totalorder %s35, %s51
      %p53 = scmp.eq.s32.totalorder %s27, 0
      %p54 = por %p52, %p53
      %s56 = sadd.s32 %s55, 1
      %p59 = scmp.eq.s32.totalorder %s21, 1
      %p60 = scmp.ne.s32.totalorder %s55, %s57
      %p61 = scmp.eq.s32.totalorder %s21, 0
      %p62 = por %p60, %p61
      %p63 = scmp.ne.s32.totalorder %s55, %s57
      %p64 = scmp.eq.s32.totalorder %s26, 1
      %p65 = por %p63, %p64
      %p66 = scmp.ne.s32.totalorder %s57, %s58
      %p67 = scmp.eq.s32.totalorder %s26, 0
      %p68 = por %p66, %p67
      %p69 = scmp.ne.s32.totalorder %s57, %s58
      %p70 = scmp.eq.s32.totalorder %s27, 1
      %p71 = por %p69, %p70
      %p73 = scmp.ne.s32.totalorder %s58, %s72
      %p74 = scmp.eq.s32.totalorder %s27, 0
      %p75 = por %p73, %p74
      %s77 = sadd.s32 %s76, 1
      %p80 = scmp.eq.s32.totalorder %s21, 1
      %p81 = scmp.ne.s32.totalorder %s76, %s78
      %p82 = scmp.eq.s32.totalorder %s21, 0
      %p83 = por %p81, %p82
      %p84 = scmp.ne.s32.totalorder %s76, %s78
      %p85 = scmp.eq.s32.totalorder %s26, 1
      %p86 = por %p84, %p85
      %p87 = scmp.ne.s32.totalorder %s78, %s79
      %p88 = scmp.eq.s32.totalorder %s26, 0
      %p89 = por %p87, %p88
      %p90 = scmp.ne.s32.totalorder %s78, %s79
      %p91 = scmp.eq.s32.totalorder %s27, 1
      %p92 = por %p90, %p91
      %p94 = scmp.ne.s32.totalorder %s79, %s93
      %p95 = scmp.eq.s32.totalorder %s27, 0
      %p96 = por %p94, %p95
      %s98 = sadd.s32 %s97, 1
      %p101 = scmp.eq.s32.totalorder %s21, 1
      %p102 = scmp.ne.s32.totalorder %s97, %s99
      %p103 = scmp.eq.s32.totalorder %s21, 0
      %p104 = por %p102, %p103
      %p105 = scmp.ne.s32.totalorder %s97, %s99
      %p106 = scmp.eq.s32.totalorder %s26, 1
      %p107 = por %p105, %p106
      %p108 = scmp.ne.s32.totalorder %s99, %s100
      %p109 = scmp.eq.s32.totalorder %s26, 0
      %p110 = por %p108, %p109
      %p111 = scmp.ne.s32.totalorder %s99, %s100
      %p112 = scmp.eq.s32.totalorder %s27, 1
      %p113 = por %p111, %p112
      %p115 = scmp.ne.s32.totalorder %s100, %s114
      %p116 = scmp.eq.s32.totalorder %s27, 0
      %p117 = por %p115, %p116
      %s119 = sadd.s32 %s118, 1
      %p122 = scmp.eq.s32.totalorder %s21, 1
      %p123 = scmp.ne.s32.totalorder %s118, %s120
      %p124 = scmp.eq.s32.totalorder %s21, 0
      %p125 = por %p123, %p124
      %p126 = scmp.ne.s32.totalorder %s118, %s120
      %p127 = scmp.eq.s32.totalorder %s26, 1
      %p128 = por %p126, %p127
      %p129 = scmp.ne.s32.totalorder %s120, %s121
      %p130 = scmp.eq.s32.totalorder %s26, 0
      %p131 = por %p129, %p130
      %p132 = scmp.ne.s32.totalorder %s120, %s121
      %p133 = scmp.eq.s32.totalorder %s27, 1
      %p134 = por %p132, %p133
      %p136 = scmp.ne.s32.totalorder %s121, %s135
      %p137 = scmp.eq.s32.totalorder %s27, 0
      %p138 = por %p136, %p137
      %s140 = sadd.s32 %s139, 1
      %p143 = scmp.eq.s32.totalorder %s21, 1
      %p144 = scmp.ne.s32.totalorder %s139, %s141
      %p145 = scmp.eq.s32.totalorder %s21, 0
      %p146 = por %p144, %p145
      %p147 = scmp.ne.s32.totalorder %s139, %s141
      %p148 = scmp.eq.s32.totalorder %s26, 1
      %p149 = por %p147, %p148
      %p150 = scmp.ne.s32.totalorder %s141, %s142
      %p151 = scmp.eq.s32.totalorder %s26, 0
      %p152 = por %p150, %p151
      %p153 = scmp.ne.s32.totalorder %s141, %s142
      %p154 = scmp.eq.s32.totalorder %s27, 1
      %p155 = por %p153, %p154
      %p157 = scmp.ne.s32.totalorder %s142, %s156
      %p158 = scmp.eq.s32.totalorder %s27, 0
      %p159 = por %p157, %p158
      %s161 = sadd.s32 %s160, 1
      %p164 = scmp.eq.s32.totalorder %s21, 1
      %p165 = scmp.ne.s32.totalorder %s160, %s162
      %p166 = scmp.eq.s32.totalorder %s21, 0
      %p167 = por %p165, %p166
      %p168 = scmp.ne.s32.totalorder %s160, %s162
      %p169 = scmp.eq.s32.totalorder %s26, 1
      %p170 = por %p168, %p169
      %p171 = scmp.ne.s32.totalorder %s162, %s163
      %p172 = scmp.eq.s32.totalorder %s26, 0
      %p173 = por %p171, %p172
      %p174 = scmp.ne.s32.totalorder %s162, %s163
      %p175 = scmp.eq.s32.totalorder %s27, 1
      %p176 = por %p174, %p175
      %p178 = scmp.ne.s32.totalorder %s163, %s177
      %p179 = scmp.eq.s32.totalorder %s27, 0
      %p180 = por %p178, %p179
      %s182 = sadd.s32 %s181, 1
      %p185 = scmp.eq.s32.totalorder %s21, 1
      %p186 = scmp.ne.s32.totalorder %s181, %s183
      %p187 = scmp.eq.s32.totalorder %s21, 0
      %p188 = por %p186, %p187
      %p189 = scmp.ne.s32.totalorder %s181, %s183
      %p190 = scmp.eq.s32.totalorder %s26, 1
      %p191 = por %p189, %p190
      %p192 = scmp.ne.s32.totalorder %s183, %s184
      %p193 = scmp.eq.s32.totalorder %s26, 0
      %p194 = por %p192, %p193
      %p195 = scmp.ne.s32.totalorder %s183, %s184
      %p196 = scmp.eq.s32.totalorder %s27, 1
      %p197 = por %p195, %p196
      %p199 = scmp.ne.s32.totalorder %s184, %s198
      %p200 = scmp.eq.s32.totalorder %s27, 0
      %p201 = por %p199, %p200
      %s203 = sadd.s32 %s202, 1
      %p206 = scmp.eq.s32.totalorder %s21, 1
      %p207 = scmp.ne.s32.totalorder %s202, %s204
      %p208 = scmp.eq.s32.totalorder %s21, 0
      %p209 = por %p207, %p208
      %p210 = scmp.ne.s32.totalorder %s202, %s204
      %p211 = scmp.eq.s32.totalorder %s26, 1
      %p212 = por %p210, %p211
      %p213 = scmp.ne.s32.totalorder %s204, %s205
      %p214 = scmp.eq.s32.totalorder %s26, 0
      %p215 = por %p213, %p214
      %p216 = scmp.ne.s32.totalorder %s204, %s205
      %p217 = scmp.eq.s32.totalorder %s27, 1
      %p218 = por %p216, %p217
      %p220 = scmp.ne.s32.totalorder %s205, %s219
      %p221 = scmp.eq.s32.totalorder %s27, 0
      %p222 = por %p220, %p221
      %s224 = sadd.s32 %s223, 1
      %p227 = scmp.eq.s32.totalorder %s21, 1
      %p228 = scmp.ne.s32.totalorder %s223, %s225
      %p229 = scmp.eq.s32.totalorder %s21, 0
      %p230 = por %p228, %p229
      %p231 = scmp.ne.s32.totalorder %s223, %s225
      %p232 = scmp.eq.s32.totalorder %s26, 1
      %p233 = por %p231, %p232
      %p234 = scmp.ne.s32.totalorder %s225, %s226
      %p235 = scmp.eq.s32.totalorder %s26, 0
      %p236 = por %p234, %p235
      %p237 = scmp.ne.s32.totalorder %s225, %s226
      %p238 = scmp.eq.s32.totalorder %s27, 1
      %p239 = por %p237, %p238
      %p241 = scmp.ne.s32.totalorder %s226, %s240
      %p242 = scmp.eq.s32.totalorder %s27, 0
      %p243 = por %p241, %p242
      %s245 = sadd.s32 %s244, 1
      %p248 = scmp.eq.s32.totalorder %s21, 1
      %p249 = scmp.ne.s32.totalorder %s244, %s246
      %p250 = scmp.eq.s32.totalorder %s21, 0
      %p251 = por %p249, %p250
      %p252 = scmp.ne.s32.totalorder %s244, %s246
      %p253 = scmp.eq.s32.totalorder %s26, 1
      %p254 = por %p252, %p253
      %p255 = scmp.ne.s32.totalorder %s246, %s247
      %p256 = scmp.eq.s32.totalorder %s26, 0
      %p257 = por %p255, %p256
      %p258 = scmp.ne.s32.totalorder %s246, %s247
      %p259 = scmp.eq.s32.totalorder %s27, 1
      %p260 = por %p258, %p259
      %p262 = scmp.ne.s32.totalorder %s247, %s261
      %p263 = scmp.eq.s32.totalorder %s27, 0
      %p264 = por %p262, %p263
      %s266 = sadd.s32 %s265, 1
      %p269 = scmp.eq.s32.totalorder %s21, 1
      %p270 = scmp.ne.s32.totalorder %s265, %s267
      %p271 = scmp.eq.s32.totalorder %s21, 0
      %p272 = por %p270, %p271
      %p273 = scmp.ne.s32.totalorder %s265, %s267
      %p274 = scmp.eq.s32.totalorder %s26, 1
      %p275 = por %p273, %p274
      %p276 = scmp.ne.s32.totalorder %s267, %s268
      %p277 = scmp.eq.s32.totalorder %s26, 0
      %p278 = por %p276, %p277
      %p279 = scmp.ne.s32.totalorder %s267, %s268
      %p280 = scmp.eq.s32.totalorder %s27, 1
      %p281 = por %p279, %p280
      %p283 = scmp.ne.s32.totalorder %s268, %s282
      %p284 = scmp.eq.s32.totalorder %s27, 0
      %p285 = por %p283, %p284
      %s286 = ssub.s32 %s21, %s28
      %p287 = scmp.eq.s32.totalorder %s286, 0
      %s289 = sadd.s32 %s288, 1
      %s290 = scalar_select %p287, %s288, %s289
      %p293 = pneg %p287
      %p294 = scmp.eq.s32.totalorder %s21, 1
      %p295 = por %p293, %p294
      %p296 = scmp.ne.s32.totalorder %s288, %s291
      %p297 = scmp.eq.s32.totalorder %s21, 0
      %p298 = por %p296, %p297
      %p299 = scmp.ne.s32.totalorder %s288, %s291
      %p300 = scmp.eq.s32.totalorder %s26, 1
      %p301 = por %p299, %p300
      %p302 = scmp.ne.s32.totalorder %s291, %s292
      %p303 = scmp.eq.s32.totalorder %s26, 0
      %p304 = por %p302, %p303
      %p305 = scmp.ne.s32.totalorder %s291, %s292
      %p306 = scmp.eq.s32.totalorder %s27, 1
      %p307 = por %p305, %p306
      %p309 = scmp.ne.s32.totalorder %s292, %s308
      %p310 = scmp.eq.s32.totalorder %s27, 0
      %p311 = por %p309, %p310
      %p312 = scmp.le.s32.totalorder 1, %s21
      %p313 = scmp.lt.s32.totalorder %s21, 3
      %p314 = pnand %p312, %p313
      %p315 = pneg %p314
      // Predicated region
      $region9: #{tpu_custom_call.1} parent=5 // pred_check
        _
      $region10: #{tpu_custom_call.1} parent=5 // pred_check_branch
        %317 = sbr.rel (%p314) target = $region12
      $region11: #{tpu_custom_call.1} parent=5 // pred_region
        %s318 = ssub.s32 %s21, 1
        // Predicated region
        $region13: #{tpu_custom_call.1} parent=11 // pred_check
          %p319 = pneg %p68
        $region14: #{tpu_custom_call.1} parent=11 // pred_check_branch
          %321 = sbr.rel (%p319) target = $region16
        $region15: #{tpu_custom_call.1} parent=11 // pred_region
          _
        $region16: #{tpu_custom_call.1} parent=11 // pred_fallthru
          _
        // Predicated region
        $region17: #{tpu_custom_call.1} parent=11 // pred_check
          %p322 = pneg %p89
        $region18: #{tpu_custom_call.1} parent=11 // pred_check_branch
          %324 = sbr.rel (%p322) target = $region20
        $region19: #{tpu_custom_call.1} parent=11 // pred_region
          _
        $region20: #{tpu_custom_call.1} parent=11 // pred_fallthru
          _
        // Predicated region
        $region21: #{tpu_custom_call.1} parent=11 // pred_check
          %p325 = pneg %p110
        $region22: #{tpu_custom_call.1} parent=11 // pred_check_branch
          %327 = sbr.rel (%p325) target = $region24
        $region23: #{tpu_custom_call.1} parent=11 // pred_region
          _
        $region24: #{tpu_custom_call.1} parent=11 // pred_fallthru
          _
        // Predicated region
        $region25: #{tpu_custom_call.1} parent=11 // pred_check
          %p328 = pneg %p131
        $region26: #{tpu_custom_call.1} parent=11 // pred_check_branch
          %330 = sbr.rel (%p328) target = $region28
        $region27: #{tpu_custom_call.1} parent=11 // pred_region
          _
        $region28: #{tpu_custom_call.1} parent=11 // pred_fallthru
          _
        // Predicated region
        $region29: #{tpu_custom_call.1} parent=11 // pred_check
          %p331 = pneg %p152
        $region30: #{tpu_custom_call.1} parent=11 // pred_check_branch
          %333 = sbr.rel (%p331) target = $region32
        $region31: #{tpu_custom_call.1} parent=11 // pred_region
          _
        $region32: #{tpu_custom_call.1} parent=11 // pred_fallthru
          _
        // Predicated region
        $region33: #{tpu_custom_call.1} parent=11 // pred_check
          %p334 = pneg %p173
        $region34: #{tpu_custom_call.1} parent=11 // pred_check_branch
          %336 = sbr.rel (%p334) target = $region36
        $region35: #{tpu_custom_call.1} parent=11 // pred_region
          _
        $region36: #{tpu_custom_call.1} parent=11 // pred_fallthru
          _
        // Predicated region
        $region37: #{tpu_custom_call.1} parent=11 // pred_check
          %p337 = pneg %p194
        $region38: #{tpu_custom_call.1} parent=11 // pred_check_branch
          %339 = sbr.rel (%p337) target = $region40
        $region39: #{tpu_custom_call.1} parent=11 // pred_region
          _
        $region40: #{tpu_custom_call.1} parent=11 // pred_fallthru
          _
        // Predicated region
        $region41: #{tpu_custom_call.1} parent=11 // pred_check
          %p340 = pneg %p215
        $region42: #{tpu_custom_call.1} parent=11 // pred_check_branch
          %342 = sbr.rel (%p340) target = $region44
        $region43: #{tpu_custom_call.1} parent=11 // pred_region
          _
        $region44: #{tpu_custom_call.1} parent=11 // pred_fallthru
          _
        // Predicated region
        $region45: #{tpu_custom_call.1} parent=11 // pred_check
          %p343 = pneg %p236
        $region46: #{tpu_custom_call.1} parent=11 // pred_check_branch
          %345 = sbr.rel (%p343) target = $region48
        $region47: #{tpu_custom_call.1} parent=11 // pred_region
          _
        $region48: #{tpu_custom_call.1} parent=11 // pred_fallthru
          _
        // Predicated region
        $region49: #{tpu_custom_call.1} parent=11 // pred_check
          %p346 = pneg %p257
        $region50: #{tpu_custom_call.1} parent=11 // pred_check_branch
          %348 = sbr.rel (%p346) target = $region52
        $region51: #{tpu_custom_call.1} parent=11 // pred_region
          _
        $region52: #{tpu_custom_call.1} parent=11 // pred_fallthru
          _
        // Predicated region
        $region53: #{tpu_custom_call.1} parent=11 // pred_check
          %p349 = pneg %p278
        $region54: #{tpu_custom_call.1} parent=11 // pred_check_branch
          %351 = sbr.rel (%p349) target = $region56
        $region55: #{tpu_custom_call.1} parent=11 // pred_region
          %s353 = ssub.s32 16, 16
          %354 = vsyncadd [#allocation4], %s353
          %s356 = sshll.u32 %s11, 4
          %s357 = int_to_ptr.vmem [resolvable:$true] %s356
          %359 = dma.vmem_to_smem %s357, 16, [#allocation3], [#allocation4]
        $region56: #{tpu_custom_call.1} parent=11 // pred_fallthru
          _
      $region12: #{tpu_custom_call.1} parent=5 // pred_fallthru
        _
      %p360 = scmp.lt.s32.totalorder %s21, 2
      // Predicated region
      $region57: #{tpu_custom_call.1} parent=5 // pred_check
        %p361 = pneg %p360
      $region58: #{tpu_custom_call.1} parent=5 // pred_check_branch
        %363 = sbr.rel (%p361) target = $region60
      $region59: #{tpu_custom_call.1} parent=5 // pred_region
        // Predicated region
        $region61: #{tpu_custom_call.1} parent=59 // pred_check
          %p364 = pneg %p41
        $region62: #{tpu_custom_call.1} parent=59 // pred_check_branch
          %366 = sbr.rel (%p364) target = $region64
        $region63: #{tpu_custom_call.1} parent=59 // pred_region
          %s367 = smul.u32 32, %s21
          %p368 = scmp.lt.s32.totalorder %s367, 63
          %s369 = scalar_select %p368, %s367, 63
          %s370 = smul.addr %s369, 2
          %s371 = smul.addr %s370, 8
          %s372 = scalar_lea.vmem %s0, %s371
          %s373 = smul.u32 32, %s21
        $region64: #{tpu_custom_call.1} parent=59 // pred_fallthru
          _
      $region60: #{tpu_custom_call.1} parent=5 // pred_fallthru
        _
      %p374 = scmp.le.s32.totalorder 1, %s21
      %p375 = scmp.lt.s32.totalorder %s21, 3
      %p376 = pnand %p374, %p375
      %p377 = pneg %p376
      // Predicated region
      $region65: #{tpu_custom_call.1} parent=5 // pred_check
        _
      $region66: #{tpu_custom_call.1} parent=5 // pred_check_branch
        %379 = sbr.rel (%p376) target = $region68
      $region67: #{tpu_custom_call.1} parent=5 // pred_region
        %s380 = ssub.s32 %s21, 1
        // Predicated region
        $region69: #{tpu_custom_call.1} parent=67 // pred_check
          %p381 = pneg %p278
        $region70: #{tpu_custom_call.1} parent=67 // pred_check_branch
          %383 = sbr.rel (%p381) target = $region72
        $region71: #{tpu_custom_call.1} parent=67 // pred_region
          %384 = dma.done [#allocation4], 16
        $region72: #{tpu_custom_call.1} parent=67 // pred_fallthru
          _
        %385 = sfence
        %s386 = smul.u32 32, %s26
        %p387 = scmp.lt.s32.totalorder %s386, 63
        %s388 = scalar_select %p387, %s386, 63
        %s389 = smul.addr %s388, 2
        %s390 = smul.addr %s389, 8
        %s391 = scalar_lea.vmem %s0, %s390
        %p392 = pneg %p47
        %p393 = pneg %p44
        %p394 = pneg %p68
        %p395 = pneg %p65
        %p396 = pneg %p89
        %p397 = pneg %p86
        %p398 = pneg %p110
        %p399 = pneg %p107
        %p400 = pneg %p131
        %p401 = pneg %p128
        %p402 = pneg %p152
        %p403 = pneg %p149
        %p404 = pneg %p173
        %p405 = pneg %p170
        %p406 = pneg %p194
        %p407 = pneg %p191
        %p408 = pneg %p215
        %p409 = pneg %p212
        %p410 = pneg %p236
        %p411 = pneg %p233
        %p412 = pneg %p257
        %p413 = pneg %p254
        %p414 = pneg %p278
        %p415 = pneg %p275
        %p416 = pneg %p304
        %p417 = pneg %p301
        %s418 = smul.u32 32, %s26
        %p419 = scmp.lt.s32.totalorder %s418, 63
        %s420 = scalar_select %p419, %s418, 63
        %s421 = smul.addr %s420, 8
        %s422 = scalar_lea.vmem %s12, %s421
        %s423 = smul.u32 32, %s26
        %p424 = scmp.lt.s32.totalorder %s423, 63
        %s425 = scalar_select %p424, %s423, 63
        %s426 = smul.addr %s425, 2
        %s427 = smul.addr %s426, 8
        %s428 = scalar_lea.vmem %s0, %s427
        %s429 = smul.u32 32, %s26
        %s430 = smul.u32 32, %s26
        %p431 = scmp.lt.s32.totalorder %s430, 63
        %s432 = scalar_select %p431, %s430, 63
        %s433 = smul.addr %s432, 8
        %s434 = scalar_lea.vmem %s12, %s433
        %s435 = smul.u32 32, %s26
        %v437 = vld [vmem:[%s428] sm:$0xff]
        %v438 = vld [vmem:[%s428 + $0x8] sm:$0xff]
        %v439 = vld [vmem:[%s428 + $0x10] sm:$0xff]
        %v440 = vld [vmem:[%s428 + $0x18] sm:$0xff]
        %v441 = vld [vmem:[%s428 + $0x20] sm:$0xff]
        %v442 = vld [vmem:[%s428 + $0x28] sm:$0xff]
        %v443 = vld [vmem:[%s428 + $0x30] sm:$0xff]
        %v444 = vld [vmem:[%s428 + $0x38] sm:$0xff]
        %v445 = vld [vmem:[%s428 + $0x40] sm:$0xff]
        %v446 = vld [vmem:[%s428 + $0x48] sm:$0xff]
        %v447 = vld [vmem:[%s428 + $0x50] sm:$0xff]
        %v448 = vld [vmem:[%s428 + $0x58] sm:$0xff]
        %v449 = vld [vmem:[%s428 + $0x60] sm:$0xff]
        %v450 = vld [vmem:[%s428 + $0x68] sm:$0xff]
        %v451 = vld [vmem:[%s428 + $0x70] sm:$0xff]
        %v452 = vld [vmem:[%s428 + $0x78] sm:$0xff]
        %v453 = vld [vmem:[%s428 + $0x80] sm:$0xff]
        %v454 = vld [vmem:[%s428 + $0x88] sm:$0xff]
        %v455 = vld [vmem:[%s428 + $0x90] sm:$0xff]
        %v456 = vld [vmem:[%s428 + $0x98] sm:$0xff]
        %v457 = vld [vmem:[%s428 + $0xa0] sm:$0xff]
        %v458 = vld [vmem:[%s428 + $0xa8] sm:$0xff]
        %v459 = vld [vmem:[%s428 + $0xb0] sm:$0xff]
        %v460 = vld [vmem:[%s428 + $0xb8] sm:$0xff]
        %v461 = vld [vmem:[%s428 + $0xc0] sm:$0xff]
        %v462 = vld [vmem:[%s428 + $0xc8] sm:$0xff]
        %v463 = vld [vmem:[%s428 + $0xd0] sm:$0xff]
        %v464 = vld [vmem:[%s428 + $0xd8] sm:$0xff]
        %v465 = vld [vmem:[%s428 + $0xe0] sm:$0xff]
        %v466 = vld [vmem:[%s428 + $0xe8] sm:$0xff]
        %v467 = vld [vmem:[%s428 + $0xf0] sm:$0xff]
        %v468 = vld [vmem:[%s428 + $0xf8] sm:$0xff]
        %v469 = vld [vmem:[%s428 + $0x100] sm:$0xff]
        %v470 = vld [vmem:[%s428 + $0x108] sm:$0xff]
        %v471 = vld [vmem:[%s428 + $0x110] sm:$0xff]
        %v472 = vld [vmem:[%s428 + $0x118] sm:$0xff]
        %v473 = vld [vmem:[%s428 + $0x120] sm:$0xff]
        %v474 = vld [vmem:[%s428 + $0x128] sm:$0xff]
        %v475 = vld [vmem:[%s428 + $0x130] sm:$0xff]
        %v476 = vld [vmem:[%s428 + $0x138] sm:$0xff]
        %v477 = vld [vmem:[%s428 + $0x140] sm:$0xff]
        %v478 = vld [vmem:[%s428 + $0x148] sm:$0xff]
        %v479 = vld [vmem:[%s428 + $0x150] sm:$0xff]
        %v480 = vld [vmem:[%s428 + $0x158] sm:$0xff]
        %v481 = vld [vmem:[%s428 + $0x160] sm:$0xff]
        %v482 = vld [vmem:[%s428 + $0x168] sm:$0xff]
        %v483 = vld [vmem:[%s428 + $0x170] sm:$0xff]
        %v484 = vld [vmem:[%s428 + $0x178] sm:$0xff]
        %v485 = vld [vmem:[%s428 + $0x180] sm:$0xff]
        %v486 = vld [vmem:[%s428 + $0x188] sm:$0xff]
        %v487 = vld [vmem:[%s428 + $0x190] sm:$0xff]
        %v488 = vld [vmem:[%s428 + $0x198] sm:$0xff]
        %v489 = vld [vmem:[%s428 + $0x1a0] sm:$0xff]
        %v490 = vld [vmem:[%s428 + $0x1a8] sm:$0xff]
        %v491 = vld [vmem:[%s428 + $0x1b0] sm:$0xff]
        %v492 = vld [vmem:[%s428 + $0x1b8] sm:$0xff]
        %v493 = vld [vmem:[%s428 + $0x1c0] sm:$0xff]
        %v494 = vld [vmem:[%s428 + $0x1c8] sm:$0xff]
        %v495 = vld [vmem:[%s428 + $0x1d0] sm:$0xff]
        %v496 = vld [vmem:[%s428 + $0x1d8] sm:$0xff]
        %v497 = vld [vmem:[%s428 + $0x1e0] sm:$0xff]
        %v498 = vld [vmem:[%s428 + $0x1e8] sm:$0xff]
        %v499 = vld [vmem:[%s428 + $0x1f0] sm:$0xff]
        %v500 = vld [vmem:[%s428 + $0x1f8] sm:$0xff]
        %v501 = vpack.c.bf16 %v439, %v437
        %v502 = vpack.c.bf16 %v440, %v438
        %v503 = vpack.c.bf16 %v443, %v441
        %v504 = vpack.c.bf16 %v444, %v442
        %v505 = vpack.c.bf16 %v447, %v445
        %v506 = vpack.c.bf16 %v448, %v446
        %v507 = vpack.c.bf16 %v451, %v449
        %v508 = vpack.c.bf16 %v452, %v450
        %v509 = vpack.c.bf16 %v455, %v453
        %v510 = vpack.c.bf16 %v456, %v454
        %v511 = vpack.c.bf16 %v459, %v457
        %v512 = vpack.c.bf16 %v460, %v458
        %v513 = vpack.c.bf16 %v463, %v461
        %v514 = vpack.c.bf16 %v464, %v462
        %v515 = vpack.c.bf16 %v467, %v465
        %v516 = vpack.c.bf16 %v468, %v466
        %v517 = vpack.c.bf16 %v471, %v469
        %v518 = vpack.c.bf16 %v472, %v470
        %v519 = vpack.c.bf16 %v475, %v473
        %v520 = vpack.c.bf16 %v476, %v474
        %v521 = vpack.c.bf16 %v479, %v477
        %v522 = vpack.c.bf16 %v480, %v478
        %v523 = vpack.c.bf16 %v483, %v481
        %v524 = vpack.c.bf16 %v484, %v482
        %v525 = vpack.c.bf16 %v487, %v485
        %v526 = vpack.c.bf16 %v488, %v486
        %v527 = vpack.c.bf16 %v491, %v489
        %v528 = vpack.c.bf16 %v492, %v490
        %v529 = vpack.c.bf16 %v495, %v493
        %v530 = vpack.c.bf16 %v496, %v494
        %v531 = vpack.c.bf16 %v499, %v497
        %v532 = vpack.c.bf16 %v500, %v498
        %v533 = vld [vmem:[%s1] sm:$0xf]
        %v534 = vld [vmem:[%s1 + $0x4] sm:$0xf]
        %v535 = vld [vmem:[%s1 + $0x8] sm:$0xf]
        %v536 = vld [vmem:[%s1 + $0xc] sm:$0xf]
        %v537 = vld [vmem:[%s1 + $0x10] sm:$0xf]
        %v538 = vld [vmem:[%s1 + $0x14] sm:$0xf]
        %v539 = vld [vmem:[%s1 + $0x18] sm:$0xf]
        %v540 = vld [vmem:[%s1 + $0x1c] sm:$0xf]
        %v541 = vld [vmem:[%s1 + $0x20] sm:$0xf]
        %v542 = vld [vmem:[%s1 + $0x24] sm:$0xf]
        %v543 = vld [vmem:[%s1 + $0x28] sm:$0xf]
        %v544 = vld [vmem:[%s1 + $0x2c] sm:$0xf]
        %v545 = vld [vmem:[%s1 + $0x30] sm:$0xf]
        %v546 = vld [vmem:[%s1 + $0x34] sm:$0xf]
        %v547 = vld [vmem:[%s1 + $0x38] sm:$0xf]
        %v548 = vld [vmem:[%s1 + $0x3c] sm:$0xf]
        %v549 = vld [vmem:[%s1 + $0x40] sm:$0xf]
        %v550 = vld [vmem:[%s1 + $0x44] sm:$0xf]
        %v551 = vld [vmem:[%s1 + $0x48] sm:$0xf]
        %v552 = vld [vmem:[%s1 + $0x4c] sm:$0xf]
        %v553 = vld [vmem:[%s1 + $0x50] sm:$0xf]
        %v554 = vld [vmem:[%s1 + $0x54] sm:$0xf]
        %v555 = vld [vmem:[%s1 + $0x58] sm:$0xf]
        %v556 = vld [vmem:[%s1 + $0x5c] sm:$0xf]
        %v557 = vld [vmem:[%s1 + $0x60] sm:$0xf]
        %v558 = vld [vmem:[%s2] sm:$0x1]
        %v560 = vlaneseq
        %v561 = vshrl.u32 %v560, 7
        %v562 = vsub.s32 0, %v561
        %v563 = vrot.slane %v558, %v562
        %v590 = vunpack.c.l.b16 %v533
        %v591 = vunpack.c.l.b16 %v534
        %v592 = vunpack.c.l.b16 %v535
        %v593 = vunpack.c.l.b16 %v536
        %v594 = vunpack.c.l.b16 %v537
        %v595 = vunpack.c.l.b16 %v538
        %v596 = vunpack.c.l.b16 %v539
        %v597 = vunpack.c.l.b16 %v540
        %v598 = vunpack.c.l.b16 %v541
        %v599 = vunpack.c.l.b16 %v542
        %v600 = vunpack.c.l.b16 %v543
        %v601 = vunpack.c.l.b16 %v544
        %v602 = vunpack.c.l.b16 %v545
        %v603 = vunpack.c.l.b16 %v546
        %v604 = vunpack.c.l.b16 %v547
        %v605 = vunpack.c.l.b16 %v548
        %v606 = vunpack.c.l.b16 %v549
        %v607 = vunpack.c.l.b16 %v550
        %v608 = vunpack.c.l.b16 %v551
        %v609 = vunpack.c.l.b16 %v552
        %v610 = vunpack.c.l.b16 %v553
        %v611 = vunpack.c.l.b16 %v554
        %v612 = vunpack.c.l.b16 %v555
        %v613 = vunpack.c.l.b16 %v556
        %v614 = vunpack.c.l.b16 %v557
        %v615 = vpack.c.b16 %v591, %v590
        %v616 = vpack.c.b16 %v593, %v592
        %v617 = vpack.c.b16 %v595, %v594
        %v618 = vpack.c.b16 %v597, %v596
        %v619 = vpack.c.b16 %v599, %v598
        %v620 = vpack.c.b16 %v601, %v600
        %v621 = vpack.c.b16 %v603, %v602
        %v622 = vpack.c.b16 %v605, %v604
        %v623 = vpack.c.b16 %v607, %v606
        %v624 = vpack.c.b16 %v609, %v608
        %v625 = vpack.c.b16 %v611, %v610
        %v626 = vpack.c.b16 %v613, %v612
        %v627 = vpack.c.b16 %v614, %v614
        %vm640 = vcmask 588800
        %v642 = vsel %vm640, %v502, 0
        %v645 = vsel %vm640, %v504, 0
        %v648 = vsel %vm640, %v506, 0
        %v651 = vsel %vm640, %v508, 0
        %v654 = vsel %vm640, %v510, 0
        %v657 = vsel %vm640, %v512, 0
        %v660 = vsel %vm640, %v514, 0
        %v663 = vsel %vm640, %v516, 0
        %v666 = vsel %vm640, %v518, 0
        %v669 = vsel %vm640, %v520, 0
        %v672 = vsel %vm640, %v522, 0
        %v675 = vsel %vm640, %v524, 0
        %v678 = vsel %vm640, %v526, 0
        %v681 = vsel %vm640, %v528, 0
        %v684 = vsel %vm640, %v530, 0
        %v687 = vsel %vm640, %v532, 0
        %vm689 = vcmask 1043456
        %v691 = vsel %vm689, %v627, 0
        %693 = vmatprep.subr.bf16.mxu0 0
        %694 = vmatpush1.bf16.msra.mxu0 %v615
        %695 = vmatprep.subr.bf16.mxu0 0
        %696 = vmatpush1.bf16.msra.mxu0 %v616
        %697 = vmatprep.subr.bf16.mxu0 0
        %698 = vmatpush1.bf16.msra.mxu0 %v617
        %699 = vmatprep.subr.bf16.mxu0 0
        %700 = vmatpush1.bf16.msra.mxu0 %v618
        %701 = vmatprep.subr.bf16.mxu0 0
        %702 = vmatpush1.bf16.msra.mxu0 %v619
        %703 = vmatprep.subr.bf16.mxu0 0
        %704 = vmatpush1.bf16.msra.mxu0 %v620
        %705 = vmatprep.subr.bf16.mxu0 0
        %706 = vmatpush1.bf16.msra.mxu0 %v621
        %707 = vmatprep.subr.bf16.mxu0 0
        %708 = vmatpush1.bf16.msra.mxu0 %v622
        %709 = vmatprep.subr.bf16.mxu0 0
        %710 = vmatpush1.bf16.msra.mxu0 %v623
        %711 = vmatprep.subr.bf16.mxu0 0
        %712 = vmatpush1.bf16.msra.mxu0 %v624
        %713 = vmatprep.subr.bf16.mxu0 0
        %714 = vmatpush1.bf16.msra.mxu0 %v625
        %715 = vmatprep.subr.bf16.mxu0 0
        %716 = vmatpush1.bf16.msra.mxu0 %v626
        %717 = vmatprep.subr.bf16.mxu0 0
        %718 = vmatpush1.bf16.msra.mxu0 %v691
        %719 = vmatprep.subr.bf16.mxu0 0
        %720 = vmatpush1.bf16.msra.mxu0 0
        %721 = vmatprep.subr.bf16.mxu0 0
        %722 = vmatpush1.bf16.msra.mxu0 0
        %723 = vmatprep.subr.bf16.mxu0 0
        %724 = vmatpush1.bf16.msra.mxu0 0
        %725 = vmatprep.mubr.bf16.mxu0 %v642
        %726 = vmatmul.mubr.bf16.gmra.mrb[0].mxu0 %v501
        %v727 = vpop.f32.mrb[0].mxu0
        %v728 = vadd.f32 %v563, %v727
        %v729 = vpop.f32.mrb[0].mxu0
        %v730 = vpop.f32.mrb[0].mxu0
        %v731 = vadd.f32 %v563, %v730
        %v732 = vpop.f32.mrb[0].mxu0
        %733 = vmatprep.mubr.bf16.mxu0 %v645
        %734 = vmatmul.mubr.bf16.gmra.mrb[0].mxu0 %v503
        %v735 = vpop.f32.mrb[0].mxu0
        %v736 = vadd.f32 %v563, %v735
        %v737 = vpop.f32.mrb[0].mxu0
        %v738 = vpop.f32.mrb[0].mxu0
        %v739 = vadd.f32 %v563, %v738
        %v740 = vpop.f32.mrb[0].mxu0
        %741 = vmatprep.mubr.bf16.mxu0 %v648
        %742 = vmatmul.mubr.bf16.gmra.mrb[0].mxu0 %v505
        %v743 = vpop.f32.mrb[0].mxu0
        %v744 = vadd.f32 %v563, %v743
        %v745 = vpop.f32.mrb[0].mxu0
        %v746 = vpop.f32.mrb[0].mxu0
        %v747 = vadd.f32 %v563, %v746
        %v748 = vpop.f32.mrb[0].mxu0
        %749 = vmatprep.mubr.bf16.mxu0 %v651
        %750 = vmatmul.mubr.bf16.gmra.mrb[0].mxu0 %v507
        %v751 = vpop.f32.mrb[0].mxu0
        %v752 = vadd.f32 %v563, %v751
        %v753 = vpop.f32.mrb[0].mxu0
        %v754 = vpop.f32.mrb[0].mxu0
        %v755 = vadd.f32 %v563, %v754
        %v756 = vpop.f32.mrb[0].mxu0
        %757 = vmatprep.mubr.bf16.mxu0 %v654
        %758 = vmatmul.mubr.bf16.gmra.mrb[0].mxu0 %v509
        %v759 = vpop.f32.mrb[0].mxu0
        %v760 = vadd.f32 %v563, %v759
        %v761 = vpop.f32.mrb[0].mxu0
        %v762 = vpop.f32.mrb[0].mxu0
        %v763 = vadd.f32 %v563, %v762
        %v764 = vpop.f32.mrb[0].mxu0
        %765 = vmatprep.mubr.bf16.mxu0 %v657
        %766 = vmatmul.mubr.bf16.gmra.mrb[0].mxu0 %v511
        %v767 = vpop.f32.mrb[0].mxu0
        %v768 = vadd.f32 %v563, %v767
        %v769 = vpop.f32.mrb[0].mxu0
        %v770 = vpop.f32.mrb[0].mxu0
        %v771 = vadd.f32 %v563, %v770
        %v772 = vpop.f32.mrb[0].mxu0
        %773 = vmatprep.mubr.bf16.mxu0 %v660
        %774 = vmatmul.mubr.bf16.gmra.mrb[0].mxu0 %v513
        %v775 = vpop.f32.mrb[0].mxu0
        %v776 = vadd.f32 %v563, %v775
        %v777 = vpop.f32.mrb[0].mxu0
        %v778 = vpop.f32.mrb[0].mxu0
        %v779 = vadd.f32 %v563, %v778
        %v780 = vpop.f32.mrb[0].mxu0
        %781 = vmatprep.mubr.bf16.mxu0 %v663
        %782 = vmatmul.mubr.bf16.gmra.mrb[0].mxu0 %v515
        %v783 = vpop.f32.mrb[0].mxu0
        %v784 = vadd.f32 %v563, %v783
        %v785 = vpop.f32.mrb[0].mxu0
        %v786 = vpop.f32.mrb[0].mxu0
        %v787 = vadd.f32 %v563, %v786
        %v788 = vpop.f32.mrb[0].mxu0
        %789 = vmatprep.mubr.bf16.mxu0 %v666
        %790 = vmatmul.mubr.bf16.gmra.mrb[0].mxu0 %v517
        %v791 = vpop.f32.mrb[0].mxu0
        %v792 = vadd.f32 %v563, %v791
        %v793 = vpop.f32.mrb[0].mxu0
        %v794 = vpop.f32.mrb[0].mxu0
        %v795 = vadd.f32 %v563, %v794
        %v796 = vpop.f32.mrb[0].mxu0
        %797 = vmatprep.mubr.bf16.mxu0 %v669
        %798 = vmatmul.mubr.bf16.gmra.mrb[0].mxu0 %v519
        %v799 = vpop.f32.mrb[0].mxu0
        %v800 = vadd.f32 %v563, %v799
        %v801 = vpop.f32.mrb[0].mxu0
        %v802 = vpop.f32.mrb[0].mxu0
        %v803 = vadd.f32 %v563, %v802
        %v804 = vpop.f32.mrb[0].mxu0
        %805 = vmatprep.mubr.bf16.mxu0 %v672
        %806 = vmatmul.mubr.bf16.gmra.mrb[0].mxu0 %v521
        %v807 = vpop.f32.mrb[0].mxu0
        %v808 = vadd.f32 %v563, %v807
        %v809 = vpop.f32.mrb[0].mxu0
        %v810 = vpop.f32.mrb[0].mxu0
        %v811 = vadd.f32 %v563, %v810
        %v812 = vpop.f32.mrb[0].mxu0
        %813 = vmatprep.mubr.bf16.mxu0 %v675
        %814 = vmatmul.mubr.bf16.gmra.mrb[0].mxu0 %v523
        %v815 = vpop.f32.mrb[0].mxu0
        %v816 = vadd.f32 %v563, %v815
        %v817 = vpop.f32.mrb[0].mxu0
        %v818 = vpop.f32.mrb[0].mxu0
        %v819 = vadd.f32 %v563, %v818
        %v820 = vpop.f32.mrb[0].mxu0
        %821 = vmatprep.mubr.bf16.mxu0 %v678
        %822 = vmatmul.mubr.bf16.gmra.mrb[0].mxu0 %v525
        %v823 = vpop.f32.mrb[0].mxu0
        %v824 = vadd.f32 %v563, %v823
        %v825 = vpop.f32.mrb[0].mxu0
        %v826 = vpop.f32.mrb[0].mxu0
        %v827 = vadd.f32 %v563, %v826
        %v828 = vpop.f32.mrb[0].mxu0
        %829 = vmatprep.mubr.bf16.mxu0 %v681
        %830 = vmatmul.mubr.bf16.gmra.mrb[0].mxu0 %v527
        %v831 = vpop.f32.mrb[0].mxu0
        %v832 = vadd.f32 %v563, %v831
        %v833 = vpop.f32.mrb[0].mxu0
        %v834 = vpop.f32.mrb[0].mxu0
        %v835 = vadd.f32 %v563, %v834
        %v836 = vpop.f32.mrb[0].mxu0
        %837 = vmatprep.mubr.bf16.mxu0 %v684
        %838 = vmatmul.mubr.bf16.gmra.mrb[0].mxu0 %v529
        %v839 = vpop.f32.mrb[0].mxu0
        %v840 = vadd.f32 %v563, %v839
        %v841 = vpop.f32.mrb[0].mxu0
        %v842 = vpop.f32.mrb[0].mxu0
        %v843 = vadd.f32 %v563, %v842
        %v844 = vpop.f32.mrb[0].mxu0
        %845 = vmatprep.mubr.bf16.mxu0 %v687
        %846 = vmatmul.mubr.bf16.gmra.mrb[0].mxu0 %v531
        %v847 = vpop.f32.mrb[0].mxu0
        %v848 = vadd.f32 %v563, %v847
        %v849 = vpop.f32.mrb[0].mxu0
        %v850 = vpop.f32.mrb[0].mxu0
        %v851 = vadd.f32 %v563, %v850
        %v852 = vpop.f32.mrb[0].mxu0
        %853 = vdwg.mxu0
        %s854 = sld [smem:[#allocation3]]
        %vm855 = vcmp.ge.f32.partialorder %v728, 0.0
        %vm856 = vcmp.ge.f32.partialorder %v731, 0.0
        %vm857 = vcmp.ge.f32.partialorder %v736, 0.0
        %vm858 = vcmp.ge.f32.partialorder %v739, 0.0
        %vm859 = vcmp.ge.f32.partialorder %v744, 0.0
        %vm860 = vcmp.ge.f32.partialorder %v747, 0.0
        %vm861 = vcmp.ge.f32.partialorder %v752, 0.0
        %vm862 = vcmp.ge.f32.partialorder %v755, 0.0
        %vm863 = vcmp.ge.f32.partialorder %v760, 0.0
        %vm864 = vcmp.ge.f32.partialorder %v763, 0.0
        %vm865 = vcmp.ge.f32.partialorder %v768, 0.0
        %vm866 = vcmp.ge.f32.partialorder %v771, 0.0
        %vm867 = vcmp.ge.f32.partialorder %v776, 0.0
        %vm868 = vcmp.ge.f32.partialorder %v779, 0.0
        %vm869 = vcmp.ge.f32.partialorder %v784, 0.0
        %vm870 = vcmp.ge.f32.partialorder %v787, 0.0
        %vm871 = vcmp.ge.f32.partialorder %v792, 0.0
        %vm872 = vcmp.ge.f32.partialorder %v795, 0.0
        %vm873 = vcmp.ge.f32.partialorder %v800, 0.0
        %vm874 = vcmp.ge.f32.partialorder %v803, 0.0
        %vm875 = vcmp.ge.f32.partialorder %v808, 0.0
        %vm876 = vcmp.ge.f32.partialorder %v811, 0.0
        %vm877 = vcmp.ge.f32.partialorder %v816, 0.0
        %vm878 = vcmp.ge.f32.partialorder %v819, 0.0
        %vm879 = vcmp.ge.f32.partialorder %v824, 0.0
        %vm880 = vcmp.ge.f32.partialorder %v827, 0.0
        %vm881 = vcmp.ge.f32.partialorder %v832, 0.0
        %vm882 = vcmp.ge.f32.partialorder %v835, 0.0
        %vm883 = vcmp.ge.f32.partialorder %v840, 0.0
        %vm884 = vcmp.ge.f32.partialorder %v843, 0.0
        %vm885 = vcmp.ge.f32.partialorder %v848, 0.0
        %vm886 = vcmp.ge.f32.partialorder %v851, 0.0
        %v887 = vstv %s854
        %v888 = vmul.f32 %v887, %v728
        %v889 = vmul.f32 %v887, %v731
        %v890 = vmul.f32 %v887, %v736
        %v891 = vmul.f32 %v887, %v739
        %v892 = vmul.f32 %v887, %v744
        %v893 = vmul.f32 %v887, %v747
        %v894 = vmul.f32 %v887, %v752
        %v895 = vmul.f32 %v887, %v755
        %v896 = vmul.f32 %v887, %v760
        %v897 = vmul.f32 %v887, %v763
        %v898 = vmul.f32 %v887, %v768
        %v899 = vmul.f32 %v887, %v771
        %v900 = vmul.f32 %v887, %v776
        %v901 = vmul.f32 %v887, %v779
        %v902 = vmul.f32 %v887, %v784
        %v903 = vmul.f32 %v887, %v787
        %v904 = vmul.f32 %v887, %v792
        %v905 = vmul.f32 %v887, %v795
        %v906 = vmul.f32 %v887, %v800
        %v907 = vmul.f32 %v887, %v803
        %v908 = vmul.f32 %v887, %v808
        %v909 = vmul.f32 %v887, %v811
        %v910 = vmul.f32 %v887, %v816
        %v911 = vmul.f32 %v887, %v819
        %v912 = vmul.f32 %v887, %v824
        %v913 = vmul.f32 %v887, %v827
        %v914 = vmul.f32 %v887, %v832
        %v915 = vmul.f32 %v887, %v835
        %v916 = vmul.f32 %v887, %v840
        %v917 = vmul.f32 %v887, %v843
        %v918 = vmul.f32 %v887, %v848
        %v919 = vmul.f32 %v887, %v851
        %v920 = vsel %vm855, %v728, %v888
        %v921 = vsel %vm856, %v731, %v889
        %v922 = vsel %vm857, %v736, %v890
        %v923 = vsel %vm858, %v739, %v891
        %v924 = vsel %vm859, %v744, %v892
        %v925 = vsel %vm860, %v747, %v893
        %v926 = vsel %vm861, %v752, %v894
        %v927 = vsel %vm862, %v755, %v895
        %v928 = vsel %vm863, %v760, %v896
        %v929 = vsel %vm864, %v763, %v897
        %v930 = vsel %vm865, %v768, %v898
        %v931 = vsel %vm866, %v771, %v899
        %v932 = vsel %vm867, %v776, %v900
        %v933 = vsel %vm868, %v779, %v901
        %v934 = vsel %vm869, %v784, %v902
        %v935 = vsel %vm870, %v787, %v903
        %v936 = vsel %vm871, %v792, %v904
        %v937 = vsel %vm872, %v795, %v905
        %v938 = vsel %vm873, %v800, %v906
        %v939 = vsel %vm874, %v803, %v907
        %v940 = vsel %vm875, %v808, %v908
        %v941 = vsel %vm876, %v811, %v909
        %v942 = vsel %vm877, %v816, %v910
        %v943 = vsel %vm878, %v819, %v911
        %v944 = vsel %vm879, %v824, %v912
        %v945 = vsel %vm880, %v827, %v913
        %v946 = vsel %vm881, %v832, %v914
        %v947 = vsel %vm882, %v835, %v915
        %v948 = vsel %vm883, %v840, %v916
        %v949 = vsel %vm884, %v843, %v917
        %v950 = vsel %vm885, %v848, %v918
        %v951 = vsel %vm886, %v851, %v919
        %v952 = vpack.c.bf16 %v921, %v920
        %v953 = vpack.c.bf16 %v923, %v922
        %v954 = vpack.c.bf16 %v925, %v924
        %v955 = vpack.c.bf16 %v927, %v926
        %v956 = vpack.c.bf16 %v929, %v928
        %v957 = vpack.c.bf16 %v931, %v930
        %v958 = vpack.c.bf16 %v933, %v932
        %v959 = vpack.c.bf16 %v935, %v934
        %v960 = vpack.c.bf16 %v937, %v936
        %v961 = vpack.c.bf16 %v939, %v938
        %v962 = vpack.c.bf16 %v941, %v940
        %v963 = vpack.c.bf16 %v943, %v942
        %v964 = vpack.c.bf16 %v945, %v944
        %v965 = vpack.c.bf16 %v947, %v946
        %v966 = vpack.c.bf16 %v949, %v948
        %v967 = vpack.c.bf16 %v951, %v950
        %v968 = vld [vmem:[%s3] sm:$0xf]
        %v969 = vld [vmem:[%s3 + $0x4] sm:$0xf]
        %v970 = vld [vmem:[%s3 + $0x8] sm:$0xf]
        %v971 = vld [vmem:[%s3 + $0xc] sm:$0xf]
        %v972 = vld [vmem:[%s3 + $0x10] sm:$0xf]
        %v973 = vld [vmem:[%s3 + $0x14] sm:$0xf]
        %v974 = vld [vmem:[%s3 + $0x18] sm:$0xf]
        %v975 = vld [vmem:[%s3 + $0x1c] sm:$0xf]
        %v976 = vld [vmem:[%s3 + $0x20] sm:$0xf]
        %v977 = vld [vmem:[%s3 + $0x24] sm:$0xf]
        %v978 = vld [vmem:[%s3 + $0x28] sm:$0xf]
        %v979 = vld [vmem:[%s3 + $0x2c] sm:$0xf]
        %v980 = vld [vmem:[%s3 + $0x30] sm:$0xf]
        %v981 = vld [vmem:[%s3 + $0x34] sm:$0xf]
        %v982 = vld [vmem:[%s3 + $0x38] sm:$0xf]
        %v983 = vld [vmem:[%s3 + $0x3c] sm:$0xf]
        %v984 = vld [vmem:[%s4] sm:$0x1]
        %v986 = vlaneseq
        %v987 = vshrl.u32 %v986, 7
        %v988 = vsub.s32 0, %v987
        %v989 = vrot.slane %v984, %v988
        %v1007 = vunpack.c.l.b16 %v968
        %v1008 = vunpack.c.l.b16 %v969
        %v1009 = vunpack.c.l.b16 %v970
        %v1010 = vunpack.c.l.b16 %v971
        %v1011 = vunpack.c.l.b16 %v972
        %v1012 = vunpack.c.l.b16 %v973
        %v1013 = vunpack.c.l.b16 %v974
        %v1014 = vunpack.c.l.b16 %v975
        %v1015 = vunpack.c.l.b16 %v976
        %v1016 = vunpack.c.l.b16 %v977
        %v1017 = vunpack.c.l.b16 %v978
        %v1018 = vunpack.c.l.b16 %v979
        %v1019 = vunpack.c.l.b16 %v980
        %v1020 = vunpack.c.l.b16 %v981
        %v1021 = vunpack.c.l.b16 %v982
        %v1022 = vunpack.c.l.b16 %v983
        %v1023 = vpack.c.b16 %v1008, %v1007
        %v1024 = vpack.c.b16 %v1010, %v1009
        %v1025 = vpack.c.b16 %v1012, %v1011
        %v1026 = vpack.c.b16 %v1014, %v1013
        %v1027 = vpack.c.b16 %v1016, %v1015
        %v1028 = vpack.c.b16 %v1018, %v1017
        %v1029 = vpack.c.b16 %v1020, %v1019
        %v1030 = vpack.c.b16 %v1022, %v1021
        %1039 = vmatprep.subr.bf16.mxu0 0
        %1040 = vmatpush1.bf16.msra.mxu0 %v1023
        %1041 = vmatprep.subr.bf16.mxu0 0
        %1042 = vmatpush1.bf16.msra.mxu0 %v1024
        %1043 = vmatprep.subr.bf16.mxu0 0
        %1044 = vmatpush1.bf16.msra.mxu0 %v1025
        %1045 = vmatprep.subr.bf16.mxu0 0
        %1046 = vmatpush1.bf16.msra.mxu0 %v1026
        %1047 = vmatprep.subr.bf16.mxu0 0
        %1048 = vmatpush1.bf16.msra.mxu0 %v1027
        %1049 = vmatprep.subr.bf16.mxu0 0
        %1050 = vmatpush1.bf16.msra.mxu0 %v1028
        %1051 = vmatprep.subr.bf16.mxu0 0
        %1052 = vmatpush1.bf16.msra.mxu0 %v1029
        %1053 = vmatprep.subr.bf16.mxu0 0
        %1054 = vmatpush1.bf16.msra.mxu0 %v1030
        %1055 = vmatprep.subr.bf16.mxu0 0
        %1056 = vmatpush1.bf16.msra.mxu0 0
        %1057 = vmatprep.subr.bf16.mxu0 0
        %1058 = vmatpush1.bf16.msra.mxu0 0
        %1059 = vmatprep.subr.bf16.mxu0 0
        %1060 = vmatpush1.bf16.msra.mxu0 0
        %1061 = vmatprep.subr.bf16.mxu0 0
        %1062 = vmatpush1.bf16.msra.mxu0 0
        %1063 = vmatprep.subr.bf16.mxu0 0
        %1064 = vmatpush1.bf16.msra.mxu0 0
        %1065 = vmatprep.subr.bf16.mxu0 0
        %1066 = vmatpush1.bf16.msra.mxu0 0
        %1067 = vmatprep.subr.bf16.mxu0 0
        %1068 = vmatpush1.bf16.msra.mxu0 0
        %1069 = vmatprep.subr.bf16.mxu0 0
        %1070 = vmatpush1.bf16.msra.mxu0 0
        %1071 = vmatprep.mubr.bf16.mxu0 0
        %1072 = vmatmul.mubr.bf16.gmra.mrb[0].mxu0 %v952
        %v1073 = vpop.f32.mrb[0].mxu0
        %v1074 = vadd.f32 %v989, %v1073
        %v1075 = vpop.f32.mrb[0].mxu0
        %v1076 = vpop.f32.mrb[0].mxu0
        %v1077 = vadd.f32 %v989, %v1076
        %v1078 = vpop.f32.mrb[0].mxu0
        %1079 = vmatprep.mubr.bf16.mxu0 0
        %1080 = vmatmul.mubr.bf16.gmra.mrb[0].mxu0 %v953
        %v1081 = vpop.f32.mrb[0].mxu0
        %v1082 = vadd.f32 %v989, %v1081
        %v1083 = vpop.f32.mrb[0].mxu0
        %v1084 = vpop.f32.mrb[0].mxu0
        %v1085 = vadd.f32 %v989, %v1084
        %v1086 = vpop.f32.mrb[0].mxu0
        %1087 = vmatprep.mubr.bf16.mxu0 0
        %1088 = vmatmul.mubr.bf16.gmra.mrb[0].mxu0 %v954
        %v1089 = vpop.f32.mrb[0].mxu0
        %v1090 = vadd.f32 %v989, %v1089
        %v1091 = vpop.f32.mrb[0].mxu0
        %v1092 = vpop.f32.mrb[0].mxu0
        %v1093 = vadd.f32 %v989, %v1092
        %v1094 = vpop.f32.mrb[0].mxu0
        %1095 = vmatprep.mubr.bf16.mxu0 0
        %1096 = vmatmul.mubr.bf16.gmra.mrb[0].mxu0 %v955
        %v1097 = vpop.f32.mrb[0].mxu0
        %v1098 = vadd.f32 %v989, %v1097
        %v1099 = vpop.f32.mrb[0].mxu0
        %v1100 = vpop.f32.mrb[0].mxu0
        %v1101 = vadd.f32 %v989, %v1100
        %v1102 = vpop.f32.mrb[0].mxu0
        %1103 = vmatprep.mubr.bf16.mxu0 0
        %1104 = vmatmul.mubr.bf16.gmra.mrb[0].mxu0 %v956
        %v1105 = vpop.f32.mrb[0].mxu0
        %v1106 = vadd.f32 %v989, %v1105
        %v1107 = vpop.f32.mrb[0].mxu0
        %v1108 = vpop.f32.mrb[0].mxu0
        %v1109 = vadd.f32 %v989, %v1108
        %v1110 = vpop.f32.mrb[0].mxu0
        %1111 = vmatprep.mubr.bf16.mxu0 0
        %1112 = vmatmul.mubr.bf16.gmra.mrb[0].mxu0 %v957
        %v1113 = vpop.f32.mrb[0].mxu0
        %v1114 = vadd.f32 %v989, %v1113
        %v1115 = vpop.f32.mrb[0].mxu0
        %v1116 = vpop.f32.mrb[0].mxu0
        %v1117 = vadd.f32 %v989, %v1116
        %v1118 = vpop.f32.mrb[0].mxu0
        %1119 = vmatprep.mubr.bf16.mxu0 0
        %1120 = vmatmul.mubr.bf16.gmra.mrb[0].mxu0 %v958
        %v1121 = vpop.f32.mrb[0].mxu0
        %v1122 = vadd.f32 %v989, %v1121
        %v1123 = vpop.f32.mrb[0].mxu0
        %v1124 = vpop.f32.mrb[0].mxu0
        %v1125 = vadd.f32 %v989, %v1124
        %v1126 = vpop.f32.mrb[0].mxu0
        %1127 = vmatprep.mubr.bf16.mxu0 0
        %1128 = vmatmul.mubr.bf16.gmra.mrb[0].mxu0 %v959
        %v1129 = vpop.f32.mrb[0].mxu0
        %v1130 = vadd.f32 %v989, %v1129
        %v1131 = vpop.f32.mrb[0].mxu0
        %v1132 = vpop.f32.mrb[0].mxu0
        %v1133 = vadd.f32 %v989, %v1132
        %v1134 = vpop.f32.mrb[0].mxu0
        %1135 = vmatprep.mubr.bf16.mxu0 0
        %1136 = vmatmul.mubr.bf16.gmra.mrb[0].mxu0 %v960
        %v1137 = vpop.f32.mrb[0].mxu0
        %v1138 = vadd.f32 %v989, %v1137
        %v1139 = vpop.f32.mrb[0].mxu0
        %v1140 = vpop.f32.mrb[0].mxu0
        %v1141 = vadd.f32 %v989, %v1140
        %v1142 = vpop.f32.mrb[0].mxu0
        %1143 = vmatprep.mubr.bf16.mxu0 0
        %1144 = vmatmul.mubr.bf16.gmra.mrb[0].mxu0 %v961
        %v1145 = vpop.f32.mrb[0].mxu0
        %v1146 = vadd.f32 %v989, %v1145
        %v1147 = vpop.f32.mrb[0].mxu0
        %v1148 = vpop.f32.mrb[0].mxu0
        %v1149 = vadd.f32 %v989, %v1148
        %v1150 = vpop.f32.mrb[0].mxu0
        %1151 = vmatprep.mubr.bf16.mxu0 0
        %1152 = vmatmul.mubr.bf16.gmra.mrb[0].mxu0 %v962
        %v1153 = vpop.f32.mrb[0].mxu0
        %v1154 = vadd.f32 %v989, %v1153
        %v1155 = vpop.f32.mrb[0].mxu0
        %v1156 = vpop.f32.mrb[0].mxu0
        %v1157 = vadd.f32 %v989, %v1156
        %v1158 = vpop.f32.mrb[0].mxu0
        %1159 = vmatprep.mubr.bf16.mxu0 0
        %1160 = vmatmul.mubr.bf16.gmra.mrb[0].mxu0 %v963
        %v1161 = vpop.f32.mrb[0].mxu0
        %v1162 = vadd.f32 %v989, %v1161
        %v1163 = vpop.f32.mrb[0].mxu0
        %v1164 = vpop.f32.mrb[0].mxu0
        %v1165 = vadd.f32 %v989, %v1164
        %v1166 = vpop.f32.mrb[0].mxu0
        %1167 = vmatprep.mubr.bf16.mxu0 0
        %1168 = vmatmul.mubr.bf16.gmra.mrb[0].mxu0 %v964
        %v1169 = vpop.f32.mrb[0].mxu0
        %v1170 = vadd.f32 %v989, %v1169
        %v1171 = vpop.f32.mrb[0].mxu0
        %v1172 = vpop.f32.mrb[0].mxu0
        %v1173 = vadd.f32 %v989, %v1172
        %v1174 = vpop.f32.mrb[0].mxu0
        %1175 = vmatprep.mubr.bf16.mxu0 0
        %1176 = vmatmul.mubr.bf16.gmra.mrb[0].mxu0 %v965
        %v1177 = vpop.f32.mrb[0].mxu0
        %v1178 = vadd.f32 %v989, %v1177
        %v1179 = vpop.f32.mrb[0].mxu0
        %v1180 = vpop.f32.mrb[0].mxu0
        %v1181 = vadd.f32 %v989, %v1180
        %v1182 = vpop.f32.mrb[0].mxu0
        %1183 = vmatprep.mubr.bf16.mxu0 0
        %1184 = vmatmul.mubr.bf16.gmra.mrb[0].mxu0 %v966
        %v1185 = vpop.f32.mrb[0].mxu0
        %v1186 = vadd.f32 %v989, %v1185
        %v1187 = vpop.f32.mrb[0].mxu0
        %v1188 = vpop.f32.mrb[0].mxu0
        %v1189 = vadd.f32 %v989, %v1188
        %v1190 = vpop.f32.mrb[0].mxu0
        %1191 = vmatprep.mubr.bf16.mxu0 0
        %1192 = vmatmul.mubr.bf16.gmra.mrb[0].mxu0 %v967
        %v1193 = vpop.f32.mrb[0].mxu0
        %v1194 = vadd.f32 %v989, %v1193
        %v1195 = vpop.f32.mrb[0].mxu0
        %v1196 = vpop.f32.mrb[0].mxu0
        %v1197 = vadd.f32 %v989, %v1196
        %v1198 = vpop.f32.mrb[0].mxu0
        %1199 = vdwg.mxu0
        %s1200 = sld [smem:[#allocation3 + $0x1]]
        %vm1201 = vcmp.ge.f32.partialorder %v1074, 0.0
        %vm1202 = vcmp.ge.f32.partialorder %v1077, 0.0
        %vm1203 = vcmp.ge.f32.partialorder %v1082, 0.0
        %vm1204 = vcmp.ge.f32.partialorder %v1085, 0.0
        %vm1205 = vcmp.ge.f32.partialorder %v1090, 0.0
        %vm1206 = vcmp.ge.f32.partialorder %v1093, 0.0
        %vm1207 = vcmp.ge.f32.partialorder %v1098, 0.0
        %vm1208 = vcmp.ge.f32.partialorder %v1101, 0.0
        %vm1209 = vcmp.ge.f32.partialorder %v1106, 0.0
        %vm1210 = vcmp.ge.f32.partialorder %v1109, 0.0
        %vm1211 = vcmp.ge.f32.partialorder %v1114, 0.0
        %vm1212 = vcmp.ge.f32.partialorder %v1117, 0.0
        %vm1213 = vcmp.ge.f32.partialorder %v1122, 0.0
        %vm1214 = vcmp.ge.f32.partialorder %v1125, 0.0
        %vm1215 = vcmp.ge.f32.partialorder %v1130, 0.0
        %vm1216 = vcmp.ge.f32.partialorder %v1133, 0.0
        %vm1217 = vcmp.ge.f32.partialorder %v1138, 0.0
        %vm1218 = vcmp.ge.f32.partialorder %v1141, 0.0
        %vm1219 = vcmp.ge.f32.partialorder %v1146, 0.0
        %vm1220 = vcmp.ge.f32.partialorder %v1149, 0.0
        %vm1221 = vcmp.ge.f32.partialorder %v1154, 0.0
        %vm1222 = vcmp.ge.f32.partialorder %v1157, 0.0
        %vm1223 = vcmp.ge.f32.partialorder %v1162, 0.0
        %vm1224 = vcmp.ge.f32.partialorder %v1165, 0.0
        %vm1225 = vcmp.ge.f32.partialorder %v1170, 0.0
        %vm1226 = vcmp.ge.f32.partialorder %v1173, 0.0
        %vm1227 = vcmp.ge.f32.partialorder %v1178, 0.0
        %vm1228 = vcmp.ge.f32.partialorder %v1181, 0.0
        %vm1229 = vcmp.ge.f32.partialorder %v1186, 0.0
        %vm1230 = vcmp.ge.f32.partialorder %v1189, 0.0
        %vm1231 = vcmp.ge.f32.partialorder %v1194, 0.0
        %vm1232 = vcmp.ge.f32.partialorder %v1197, 0.0
        %v1233 = vstv %s1200
        %v1234 = vmul.f32 %v1233, %v1074
        %v1235 = vmul.f32 %v1233, %v1077
        %v1236 = vmul.f32 %v1233, %v1082
        %v1237 = vmul.f32 %v1233, %v1085
        %v1238 = vmul.f32 %v1233, %v1090
        %v1239 = vmul.f32 %v1233, %v1093
        %v1240 = vmul.f32 %v1233, %v1098
        %v1241 = vmul.f32 %v1233, %v1101
        %v1242 = vmul.f32 %v1233, %v1106
        %v1243 = vmul.f32 %v1233, %v1109
        %v1244 = vmul.f32 %v1233, %v1114
        %v1245 = vmul.f32 %v1233, %v1117
        %v1246 = vmul.f32 %v1233, %v1122
        %v1247 = vmul.f32 %v1233, %v1125
        %v1248 = vmul.f32 %v1233, %v1130
        %v1249 = vmul.f32 %v1233, %v1133
        %v1250 = vmul.f32 %v1233, %v1138
        %v1251 = vmul.f32 %v1233, %v1141
        %v1252 = vmul.f32 %v1233, %v1146
        %v1253 = vmul.f32 %v1233, %v1149
        %v1254 = vmul.f32 %v1233, %v1154
        %v1255 = vmul.f32 %v1233, %v1157
        %v1256 = vmul.f32 %v1233, %v1162
        %v1257 = vmul.f32 %v1233, %v1165
        %v1258 = vmul.f32 %v1233, %v1170
        %v1259 = vmul.f32 %v1233, %v1173
        %v1260 = vmul.f32 %v1233, %v1178
        %v1261 = vmul.f32 %v1233, %v1181
        %v1262 = vmul.f32 %v1233, %v1186
        %v1263 = vmul.f32 %v1233, %v1189
        %v1264 = vmul.f32 %v1233, %v1194
        %v1265 = vmul.f32 %v1233, %v1197
        %v1266 = vsel %vm1201, %v1074, %v1234
        %v1267 = vsel %vm1202, %v1077, %v1235
        %v1268 = vsel %vm1203, %v1082, %v1236
        %v1269 = vsel %vm1204, %v1085, %v1237
        %v1270 = vsel %vm1205, %v1090, %v1238
        %v1271 = vsel %vm1206, %v1093, %v1239
        %v1272 = vsel %vm1207, %v1098, %v1240
        %v1273 = vsel %vm1208, %v1101, %v1241
        %v1274 = vsel %vm1209, %v1106, %v1242
        %v1275 = vsel %vm1210, %v1109, %v1243
        %v1276 = vsel %vm1211, %v1114, %v1244
        %v1277 = vsel %vm1212, %v1117, %v1245
        %v1278 = vsel %vm1213, %v1122, %v1246
        %v1279 = vsel %vm1214, %v1125, %v1247
        %v1280 = vsel %vm1215, %v1130, %v1248
        %v1281 = vsel %vm1216, %v1133, %v1249
        %v1282 = vsel %vm1217, %v1138, %v1250
        %v1283 = vsel %vm1218, %v1141, %v1251
        %v1284 = vsel %vm1219, %v1146, %v1252
        %v1285 = vsel %vm1220, %v1149, %v1253
        %v1286 = vsel %vm1221, %v1154, %v1254
        %v1287 = vsel %vm1222, %v1157, %v1255
        %v1288 = vsel %vm1223, %v1162, %v1256
        %v1289 = vsel %vm1224, %v1165, %v1257
        %v1290 = vsel %vm1225, %v1170, %v1258
        %v1291 = vsel %vm1226, %v1173, %v1259
        %v1292 = vsel %vm1227, %v1178, %v1260
        %v1293 = vsel %vm1228, %v1181, %v1261
        %v1294 = vsel %vm1229, %v1186, %v1262
        %v1295 = vsel %vm1230, %v1189, %v1263
        %v1296 = vsel %vm1231, %v1194, %v1264
        %v1297 = vsel %vm1232, %v1197, %v1265
        %v1298 = vpack.c.bf16 %v1267, %v1266
        %v1299 = vpack.c.bf16 %v1269, %v1268
        %v1300 = vpack.c.bf16 %v1271, %v1270
        %v1301 = vpack.c.bf16 %v1273, %v1272
        %v1302 = vpack.c.bf16 %v1275, %v1274
        %v1303 = vpack.c.bf16 %v1277, %v1276
        %v1304 = vpack.c.bf16 %v1279, %v1278
        %v1305 = vpack.c.bf16 %v1281, %v1280
        %v1306 = vpack.c.bf16 %v1283, %v1282
        %v1307 = vpack.c.bf16 %v1285, %v1284
        %v1308 = vpack.c.bf16 %v1287, %v1286
        %v1309 = vpack.c.bf16 %v1289, %v1288
        %v1310 = vpack.c.bf16 %v1291, %v1290
        %v1311 = vpack.c.bf16 %v1293, %v1292
        %v1312 = vpack.c.bf16 %v1295, %v1294
        %v1313 = vpack.c.bf16 %v1297, %v1296
        %v1314 = vld [vmem:[%s5] sm:$0xf]
        %v1315 = vld [vmem:[%s5 + $0x4] sm:$0xf]
        %v1316 = vld [vmem:[%s5 + $0x8] sm:$0xf]
        %v1317 = vld [vmem:[%s5 + $0xc] sm:$0xf]
        %v1318 = vld [vmem:[%s5 + $0x10] sm:$0xf]
        %v1319 = vld [vmem:[%s5 + $0x14] sm:$0xf]
        %v1320 = vld [vmem:[%s5 + $0x18] sm:$0xf]
        %v1321 = vld [vmem:[%s5 + $0x1c] sm:$0xf]
        %v1322 = vld [vmem:[%s6] sm:$0x1]
        %v1324 = vlaneseq
        %v1325 = vshrl.u32 %v1324, 7
        %v1326 = vsub.s32 0, %v1325
        %v1327 = vrot.slane %v1322, %v1326
        %v1337 = vunpack.c.l.b16 %v1314
        %v1338 = vunpack.c.l.b16 %v1315
        %v1339 = vunpack.c.l.b16 %v1316
        %v1340 = vunpack.c.l.b16 %v1317
        %v1341 = vunpack.c.l.b16 %v1318
        %v1342 = vunpack.c.l.b16 %v1319
        %v1343 = vunpack.c.l.b16 %v1320
        %v1344 = vunpack.c.l.b16 %v1321
        %v1345 = vpack.c.b16 %v1338, %v1337
        %v1346 = vpack.c.b16 %v1340, %v1339
        %v1347 = vpack.c.b16 %v1342, %v1341
        %v1348 = vpack.c.b16 %v1344, %v1343
        %vm1353 = vcmask 523264
        %v1355 = vsel %vm1353, %v1298, 0
        %v1358 = vsel %vm1353, %v1299, 0
        %v1361 = vsel %vm1353, %v1300, 0
        %v1364 = vsel %vm1353, %v1301, 0
        %v1367 = vsel %vm1353, %v1302, 0
        %v1370 = vsel %vm1353, %v1303, 0
        %v1373 = vsel %vm1353, %v1304, 0
        %v1376 = vsel %vm1353, %v1305, 0
        %v1379 = vsel %vm1353, %v1306, 0
        %v1382 = vsel %vm1353, %v1307, 0
        %v1385 = vsel %vm1353, %v1308, 0
        %v1388 = vsel %vm1353, %v1309, 0
        %v1391 = vsel %vm1353, %v1310, 0
        %v1394 = vsel %vm1353, %v1311, 0
        %v1397 = vsel %vm1353, %v1312, 0
        %v1400 = vsel %vm1353, %v1313, 0
        %1402 = vmatprep.subr.bf16.mxu0 0
        %1403 = vmatpush1.bf16.msra.mxu0 %v1345
        %1404 = vmatprep.subr.bf16.mxu0 0
        %1405 = vmatpush1.bf16.msra.mxu0 %v1346
        %1406 = vmatprep.subr.bf16.mxu0 0
        %1407 = vmatpush1.bf16.msra.mxu0 %v1347
        %1408 = vmatprep.subr.bf16.mxu0 0
        %1409 = vmatpush1.bf16.msra.mxu0 %v1348
        %1410 = vmatprep.subr.bf16.mxu0 0
        %1411 = vmatpush1.bf16.msra.mxu0 0
        %1412 = vmatprep.subr.bf16.mxu0 0
        %1413 = vmatpush1.bf16.msra.mxu0 0
        %1414 = vmatprep.subr.bf16.mxu0 0
        %1415 = vmatpush1.bf16.msra.mxu0 0
        %1416 = vmatprep.subr.bf16.mxu0 0
        %1417 = vmatpush1.bf16.msra.mxu0 0
        %1418 = vmatprep.subr.bf16.mxu0 0
        %1419 = vmatpush1.bf16.msra.mxu0 0
        %1420 = vmatprep.subr.bf16.mxu0 0
        %1421 = vmatpush1.bf16.msra.mxu0 0
        %1422 = vmatprep.subr.bf16.mxu0 0
        %1423 = vmatpush1.bf16.msra.mxu0 0
        %1424 = vmatprep.subr.bf16.mxu0 0
        %1425 = vmatpush1.bf16.msra.mxu0 0
        %1426 = vmatprep.subr.bf16.mxu0 0
        %1427 = vmatpush1.bf16.msra.mxu0 0
        %1428 = vmatprep.subr.bf16.mxu0 0
        %1429 = vmatpush1.bf16.msra.mxu0 0
        %1430 = vmatprep.subr.bf16.mxu0 0
        %1431 = vmatpush1.bf16.msra.mxu0 0
        %1432 = vmatprep.subr.bf16.mxu0 0
        %1433 = vmatpush1.bf16.msra.mxu0 0
        %1434 = vmatprep.mubr.bf16.mxu0 0
        %1435 = vmatmul.mubr.bf16.gmra.mrb[0].mxu0 %v1355
        %v1436 = vpop.f32.mrb[0].mxu0
        %v1437 = vadd.f32 %v1327, %v1436
        %v1438 = vpop.f32.mrb[0].mxu0
        %v1439 = vpop.f32.mrb[0].mxu0
        %v1440 = vadd.f32 %v1327, %v1439
        %v1441 = vpop.f32.mrb[0].mxu0
        %1442 = vmatprep.mubr.bf16.mxu0 0
        %1443 = vmatmul.mubr.bf16.gmra.mrb[0].mxu0 %v1358
        %v1444 = vpop.f32.mrb[0].mxu0
        %v1445 = vadd.f32 %v1327, %v1444
        %v1446 = vpop.f32.mrb[0].mxu0
        %v1447 = vpop.f32.mrb[0].mxu0
        %v1448 = vadd.f32 %v1327, %v1447
        %v1449 = vpop.f32.mrb[0].mxu0
        %1450 = vmatprep.mubr.bf16.mxu0 0
        %1451 = vmatmul.mubr.bf16.gmra.mrb[0].mxu0 %v1361
        %v1452 = vpop.f32.mrb[0].mxu0
        %v1453 = vadd.f32 %v1327, %v1452
        %v1454 = vpop.f32.mrb[0].mxu0
        %v1455 = vpop.f32.mrb[0].mxu0
        %v1456 = vadd.f32 %v1327, %v1455
        %v1457 = vpop.f32.mrb[0].mxu0
        %1458 = vmatprep.mubr.bf16.mxu0 0
        %1459 = vmatmul.mubr.bf16.gmra.mrb[0].mxu0 %v1364
        %v1460 = vpop.f32.mrb[0].mxu0
        %v1461 = vadd.f32 %v1327, %v1460
        %v1462 = vpop.f32.mrb[0].mxu0
        %v1463 = vpop.f32.mrb[0].mxu0
        %v1464 = vadd.f32 %v1327, %v1463
        %v1465 = vpop.f32.mrb[0].mxu0
        %1466 = vmatprep.mubr.bf16.mxu0 0
        %1467 = vmatmul.mubr.bf16.gmra.mrb[0].mxu0 %v1367
        %v1468 = vpop.f32.mrb[0].mxu0
        %v1469 = vadd.f32 %v1327, %v1468
        %v1470 = vpop.f32.mrb[0].mxu0
        %v1471 = vpop.f32.mrb[0].mxu0
        %v1472 = vadd.f32 %v1327, %v1471
        %v1473 = vpop.f32.mrb[0].mxu0
        %1474 = vmatprep.mubr.bf16.mxu0 0
        %1475 = vmatmul.mubr.bf16.gmra.mrb[0].mxu0 %v1370
        %v1476 = vpop.f32.mrb[0].mxu0
        %v1477 = vadd.f32 %v1327, %v1476
        %v1478 = vpop.f32.mrb[0].mxu0
        %v1479 = vpop.f32.mrb[0].mxu0
        %v1480 = vadd.f32 %v1327, %v1479
        %v1481 = vpop.f32.mrb[0].mxu0
        %1482 = vmatprep.mubr.bf16.mxu0 0
        %1483 = vmatmul.mubr.bf16.gmra.mrb[0].mxu0 %v1373
        %v1484 = vpop.f32.mrb[0].mxu0
        %v1485 = vadd.f32 %v1327, %v1484
        %v1486 = vpop.f32.mrb[0].mxu0
        %v1487 = vpop.f32.mrb[0].mxu0
        %v1488 = vadd.f32 %v1327, %v1487
        %v1489 = vpop.f32.mrb[0].mxu0
        %1490 = vmatprep.mubr.bf16.mxu0 0
        %1491 = vmatmul.mubr.bf16.gmra.mrb[0].mxu0 %v1376
        %v1492 = vpop.f32.mrb[0].mxu0
        %v1493 = vadd.f32 %v1327, %v1492
        %v1494 = vpop.f32.mrb[0].mxu0
        %v1495 = vpop.f32.mrb[0].mxu0
        %v1496 = vadd.f32 %v1327, %v1495
        %v1497 = vpop.f32.mrb[0].mxu0
        %1498 = vmatprep.mubr.bf16.mxu0 0
        %1499 = vmatmul.mubr.bf16.gmra.mrb[0].mxu0 %v1379
        %v1500 = vpop.f32.mrb[0].mxu0
        %v1501 = vadd.f32 %v1327, %v1500
        %v1502 = vpop.f32.mrb[0].mxu0
        %v1503 = vpop.f32.mrb[0].mxu0
        %v1504 = vadd.f32 %v1327, %v1503
        %v1505 = vpop.f32.mrb[0].mxu0
        %1506 = vmatprep.mubr.bf16.mxu0 0
        %1507 = vmatmul.mubr.bf16.gmra.mrb[0].mxu0 %v1382
        %v1508 = vpop.f32.mrb[0].mxu0
        %v1509 = vadd.f32 %v1327, %v1508
        %v1510 = vpop.f32.mrb[0].mxu0
        %v1511 = vpop.f32.mrb[0].mxu0
        %v1512 = vadd.f32 %v1327, %v1511
        %v1513 = vpop.f32.mrb[0].mxu0
        %1514 = vmatprep.mubr.bf16.mxu0 0
        %1515 = vmatmul.mubr.bf16.gmra.mrb[0].mxu0 %v1385
        %v1516 = vpop.f32.mrb[0].mxu0
        %v1517 = vadd.f32 %v1327, %v1516
        %v1518 = vpop.f32.mrb[0].mxu0
        %v1519 = vpop.f32.mrb[0].mxu0
        %v1520 = vadd.f32 %v1327, %v1519
        %v1521 = vpop.f32.mrb[0].mxu0
        %1522 = vmatprep.mubr.bf16.mxu0 0
        %1523 = vmatmul.mubr.bf16.gmra.mrb[0].mxu0 %v1388
        %v1524 = vpop.f32.mrb[0].mxu0
        %v1525 = vadd.f32 %v1327, %v1524
        %v1526 = vpop.f32.mrb[0].mxu0
        %v1527 = vpop.f32.mrb[0].mxu0
        %v1528 = vadd.f32 %v1327, %v1527
        %v1529 = vpop.f32.mrb[0].mxu0
        %1530 = vmatprep.mubr.bf16.mxu0 0
        %1531 = vmatmul.mubr.bf16.gmra.mrb[0].mxu0 %v1391
        %v1532 = vpop.f32.mrb[0].mxu0
        %v1533 = vadd.f32 %v1327, %v1532
        %v1534 = vpop.f32.mrb[0].mxu0
        %v1535 = vpop.f32.mrb[0].mxu0
        %v1536 = vadd.f32 %v1327, %v1535
        %v1537 = vpop.f32.mrb[0].mxu0
        %1538 = vmatprep.mubr.bf16.mxu0 0
        %1539 = vmatmul.mubr.bf16.gmra.mrb[0].mxu0 %v1394
        %v1540 = vpop.f32.mrb[0].mxu0
        %v1541 = vadd.f32 %v1327, %v1540
        %v1542 = vpop.f32.mrb[0].mxu0
        %v1543 = vpop.f32.mrb[0].mxu0
        %v1544 = vadd.f32 %v1327, %v1543
        %v1545 = vpop.f32.mrb[0].mxu0
        %1546 = vmatprep.mubr.bf16.mxu0 0
        %1547 = vmatmul.mubr.bf16.gmra.mrb[0].mxu0 %v1397
        %v1548 = vpop.f32.mrb[0].mxu0
        %v1549 = vadd.f32 %v1327, %v1548
        %v1550 = vpop.f32.mrb[0].mxu0
        %v1551 = vpop.f32.mrb[0].mxu0
        %v1552 = vadd.f32 %v1327, %v1551
        %v1553 = vpop.f32.mrb[0].mxu0
        %1554 = vmatprep.mubr.bf16.mxu0 0
        %1555 = vmatmul.mubr.bf16.gmra.mrb[0].mxu0 %v1400
        %v1556 = vpop.f32.mrb[0].mxu0
        %v1557 = vadd.f32 %v1327, %v1556
        %v1558 = vpop.f32.mrb[0].mxu0
        %v1559 = vpop.f32.mrb[0].mxu0
        %v1560 = vadd.f32 %v1327, %v1559
        %v1561 = vpop.f32.mrb[0].mxu0
        %1562 = vdwg.mxu0
        %s1563 = sld [smem:[#allocation3 + $0x2]]
        %vm1564 = vcmp.ge.f32.partialorder %v1437, 0.0
        %vm1565 = vcmp.ge.f32.partialorder %v1440, 0.0
        %vm1566 = vcmp.ge.f32.partialorder %v1445, 0.0
        %vm1567 = vcmp.ge.f32.partialorder %v1448, 0.0
        %vm1568 = vcmp.ge.f32.partialorder %v1453, 0.0
        %vm1569 = vcmp.ge.f32.partialorder %v1456, 0.0
        %vm1570 = vcmp.ge.f32.partialorder %v1461, 0.0
        %vm1571 = vcmp.ge.f32.partialorder %v1464, 0.0
        %vm1572 = vcmp.ge.f32.partialorder %v1469, 0.0
        %vm1573 = vcmp.ge.f32.partialorder %v1472, 0.0
        %vm1574 = vcmp.ge.f32.partialorder %v1477, 0.0
        %vm1575 = vcmp.ge.f32.partialorder %v1480, 0.0
        %vm1576 = vcmp.ge.f32.partialorder %v1485, 0.0
        %vm1577 = vcmp.ge.f32.partialorder %v1488, 0.0
        %vm1578 = vcmp.ge.f32.partialorder %v1493, 0.0
        %vm1579 = vcmp.ge.f32.partialorder %v1496, 0.0
        %vm1580 = vcmp.ge.f32.partialorder %v1501, 0.0
        %vm1581 = vcmp.ge.f32.partialorder %v1504, 0.0
        %vm1582 = vcmp.ge.f32.partialorder %v1509, 0.0
        %vm1583 = vcmp.ge.f32.partialorder %v1512, 0.0
        %vm1584 = vcmp.ge.f32.partialorder %v1517, 0.0
        %vm1585 = vcmp.ge.f32.partialorder %v1520, 0.0
        %vm1586 = vcmp.ge.f32.partialorder %v1525, 0.0
        %vm1587 = vcmp.ge.f32.partialorder %v1528, 0.0
        %vm1588 = vcmp.ge.f32.partialorder %v1533, 0.0
        %vm1589 = vcmp.ge.f32.partialorder %v1536, 0.0
        %vm1590 = vcmp.ge.f32.partialorder %v1541, 0.0
        %vm1591 = vcmp.ge.f32.partialorder %v1544, 0.0
        %vm1592 = vcmp.ge.f32.partialorder %v1549, 0.0
        %vm1593 = vcmp.ge.f32.partialorder %v1552, 0.0
        %vm1594 = vcmp.ge.f32.partialorder %v1557, 0.0
        %vm1595 = vcmp.ge.f32.partialorder %v1560, 0.0
        %v1596 = vstv %s1563
        %v1597 = vmul.f32 %v1596, %v1437
        %v1598 = vmul.f32 %v1596, %v1440
        %v1599 = vmul.f32 %v1596, %v1445
        %v1600 = vmul.f32 %v1596, %v1448
        %v1601 = vmul.f32 %v1596, %v1453
        %v1602 = vmul.f32 %v1596, %v1456
        %v1603 = vmul.f32 %v1596, %v1461
        %v1604 = vmul.f32 %v1596, %v1464
        %v1605 = vmul.f32 %v1596, %v1469
        %v1606 = vmul.f32 %v1596, %v1472
        %v1607 = vmul.f32 %v1596, %v1477
        %v1608 = vmul.f32 %v1596, %v1480
        %v1609 = vmul.f32 %v1596, %v1485
        %v1610 = vmul.f32 %v1596, %v1488
        %v1611 = vmul.f32 %v1596, %v1493
        %v1612 = vmul.f32 %v1596, %v1496
        %v1613 = vmul.f32 %v1596, %v1501
        %v1614 = vmul.f32 %v1596, %v1504
        %v1615 = vmul.f32 %v1596, %v1509
        %v1616 = vmul.f32 %v1596, %v1512
        %v1617 = vmul.f32 %v1596, %v1517
        %v1618 = vmul.f32 %v1596, %v1520
        %v1619 = vmul.f32 %v1596, %v1525
        %v1620 = vmul.f32 %v1596, %v1528
        %v1621 = vmul.f32 %v1596, %v1533
        %v1622 = vmul.f32 %v1596, %v1536
        %v1623 = vmul.f32 %v1596, %v1541
        %v1624 = vmul.f32 %v1596, %v1544
        %v1625 = vmul.f32 %v1596, %v1549
        %v1626 = vmul.f32 %v1596, %v1552
        %v1627 = vmul.f32 %v1596, %v1557
        %v1628 = vmul.f32 %v1596, %v1560
        %v1629 = vsel %vm1564, %v1437, %v1597
        %v1630 = vsel %vm1565, %v1440, %v1598
        %v1631 = vsel %vm1566, %v1445, %v1599
        %v1632 = vsel %vm1567, %v1448, %v1600
        %v1633 = vsel %vm1568, %v1453, %v1601
        %v1634 = vsel %vm1569, %v1456, %v1602
        %v1635 = vsel %vm1570, %v1461, %v1603
        %v1636 = vsel %vm1571, %v1464, %v1604
        %v1637 = vsel %vm1572, %v1469, %v1605
        %v1638 = vsel %vm1573, %v1472, %v1606
        %v1639 = vsel %vm1574, %v1477, %v1607
        %v1640 = vsel %vm1575, %v1480, %v1608
        %v1641 = vsel %vm1576, %v1485, %v1609
        %v1642 = vsel %vm1577, %v1488, %v1610
        %v1643 = vsel %vm1578, %v1493, %v1611
        %v1644 = vsel %vm1579, %v1496, %v1612
        %v1645 = vsel %vm1580, %v1501, %v1613
        %v1646 = vsel %vm1581, %v1504, %v1614
        %v1647 = vsel %vm1582, %v1509, %v1615
        %v1648 = vsel %vm1583, %v1512, %v1616
        %v1649 = vsel %vm1584, %v1517, %v1617
        %v1650 = vsel %vm1585, %v1520, %v1618
        %v1651 = vsel %vm1586, %v1525, %v1619
        %v1652 = vsel %vm1587, %v1528, %v1620
        %v1653 = vsel %vm1588, %v1533, %v1621
        %v1654 = vsel %vm1589, %v1536, %v1622
        %v1655 = vsel %vm1590, %v1541, %v1623
        %v1656 = vsel %vm1591, %v1544, %v1624
        %v1657 = vsel %vm1592, %v1549, %v1625
        %v1658 = vsel %vm1593, %v1552, %v1626
        %v1659 = vsel %vm1594, %v1557, %v1627
        %v1660 = vsel %vm1595, %v1560, %v1628
        %v1661 = vpack.c.bf16 %v1630, %v1629
        %v1662 = vpack.c.bf16 %v1632, %v1631
        %v1663 = vpack.c.bf16 %v1634, %v1633
        %v1664 = vpack.c.bf16 %v1636, %v1635
        %v1665 = vpack.c.bf16 %v1638, %v1637
        %v1666 = vpack.c.bf16 %v1640, %v1639
        %v1667 = vpack.c.bf16 %v1642, %v1641
        %v1668 = vpack.c.bf16 %v1644, %v1643
        %v1669 = vpack.c.bf16 %v1646, %v1645
        %v1670 = vpack.c.bf16 %v1648, %v1647
        %v1671 = vpack.c.bf16 %v1650, %v1649
        %v1672 = vpack.c.bf16 %v1652, %v1651
        %v1673 = vpack.c.bf16 %v1654, %v1653
        %v1674 = vpack.c.bf16 %v1656, %v1655
        %v1675 = vpack.c.bf16 %v1658, %v1657
        %v1676 = vpack.c.bf16 %v1660, %v1659
        %v1677 = vld [vmem:[%s7] sm:$0xf]
        %v1678 = vld [vmem:[%s7 + $0x4] sm:$0xf]
        %v1679 = vld [vmem:[%s7 + $0x8] sm:$0xf]
        %v1680 = vld [vmem:[%s7 + $0xc] sm:$0xf]
        %v1681 = vld [vmem:[%s8] sm:$0x1]
        %v1683 = vlaneseq
        %v1684 = vshrl.u32 %v1683, 7
        %v1685 = vsub.s32 0, %v1684
        %v1686 = vrot.slane %v1681, %v1685
        %v1692 = vunpack.c.l.b16 %v1677
        %v1693 = vunpack.c.l.b16 %v1678
        %v1694 = vunpack.c.l.b16 %v1679
        %v1695 = vunpack.c.l.b16 %v1680
        %v1696 = vpack.c.b16 %v1693, %v1692
        %v1697 = vpack.c.b16 %v1695, %v1694
        %vm1700 = vcmask 261120
        %v1702 = vsel %vm1700, %v1661, 0
        %v1705 = vsel %vm1700, %v1662, 0
        %v1708 = vsel %vm1700, %v1663, 0
        %v1711 = vsel %vm1700, %v1664, 0
        %v1714 = vsel %vm1700, %v1665, 0
        %v1717 = vsel %vm1700, %v1666, 0
        %v1720 = vsel %vm1700, %v1667, 0
        %v1723 = vsel %vm1700, %v1668, 0
        %v1726 = vsel %vm1700, %v1669, 0
        %v1729 = vsel %vm1700, %v1670, 0
        %v1732 = vsel %vm1700, %v1671, 0
        %v1735 = vsel %vm1700, %v1672, 0
        %v1738 = vsel %vm1700, %v1673, 0
        %v1741 = vsel %vm1700, %v1674, 0
        %v1744 = vsel %vm1700, %v1675, 0
        %v1747 = vsel %vm1700, %v1676, 0
        %1749 = vmatprep.subr.bf16.mxu0 0
        %1750 = vmatpush1.bf16.msra.mxu0 %v1696
        %1751 = vmatprep.subr.bf16.mxu0 0
        %1752 = vmatpush1.bf16.msra.mxu0 %v1697
        %1753 = vmatprep.subr.bf16.mxu0 0
        %1754 = vmatpush1.bf16.msra.mxu0 0
        %1755 = vmatprep.subr.bf16.mxu0 0
        %1756 = vmatpush1.bf16.msra.mxu0 0
        %1757 = vmatprep.subr.bf16.mxu0 0
        %1758 = vmatpush1.bf16.msra.mxu0 0
        %1759 = vmatprep.subr.bf16.mxu0 0
        %1760 = vmatpush1.bf16.msra.mxu0 0
        %1761 = vmatprep.subr.bf16.mxu0 0
        %1762 = vmatpush1.bf16.msra.mxu0 0
        %1763 = vmatprep.subr.bf16.mxu0 0
        %1764 = vmatpush1.bf16.msra.mxu0 0
        %1765 = vmatprep.subr.bf16.mxu0 0
        %1766 = vmatpush1.bf16.msra.mxu0 0
        %1767 = vmatprep.subr.bf16.mxu0 0
        %1768 = vmatpush1.bf16.msra.mxu0 0
        %1769 = vmatprep.subr.bf16.mxu0 0
        %1770 = vmatpush1.bf16.msra.mxu0 0
        %1771 = vmatprep.subr.bf16.mxu0 0
        %1772 = vmatpush1.bf16.msra.mxu0 0
        %1773 = vmatprep.subr.bf16.mxu0 0
        %1774 = vmatpush1.bf16.msra.mxu0 0
        %1775 = vmatprep.subr.bf16.mxu0 0
        %1776 = vmatpush1.bf16.msra.mxu0 0
        %1777 = vmatprep.subr.bf16.mxu0 0
        %1778 = vmatpush1.bf16.msra.mxu0 0
        %1779 = vmatprep.subr.bf16.mxu0 0
        %1780 = vmatpush1.bf16.msra.mxu0 0
        %1781 = vmatprep.mubr.bf16.mxu0 0
        %1782 = vmatmul.mubr.bf16.gmra.mrb[0].mxu0 %v1702
        %v1783 = vpop.f32.mrb[0].mxu0
        %v1784 = vadd.f32 %v1686, %v1783
        %v1785 = vpop.f32.mrb[0].mxu0
        %v1786 = vpop.f32.mrb[0].mxu0
        %v1787 = vadd.f32 %v1686, %v1786
        %v1788 = vpop.f32.mrb[0].mxu0
        %1789 = vmatprep.mubr.bf16.mxu0 0
        %1790 = vmatmul.mubr.bf16.gmra.mrb[0].mxu0 %v1705
        %v1791 = vpop.f32.mrb[0].mxu0
        %v1792 = vadd.f32 %v1686, %v1791
        %v1793 = vpop.f32.mrb[0].mxu0
        %v1794 = vpop.f32.mrb[0].mxu0
        %v1795 = vadd.f32 %v1686, %v1794
        %v1796 = vpop.f32.mrb[0].mxu0
        %1797 = vmatprep.mubr.bf16.mxu0 0
        %1798 = vmatmul.mubr.bf16.gmra.mrb[0].mxu0 %v1708
        %v1799 = vpop.f32.mrb[0].mxu0
        %v1800 = vadd.f32 %v1686, %v1799
        %v1801 = vpop.f32.mrb[0].mxu0
        %v1802 = vpop.f32.mrb[0].mxu0
        %v1803 = vadd.f32 %v1686, %v1802
        %v1804 = vpop.f32.mrb[0].mxu0
        %1805 = vmatprep.mubr.bf16.mxu0 0
        %1806 = vmatmul.mubr.bf16.gmra.mrb[0].mxu0 %v1711
        %v1807 = vpop.f32.mrb[0].mxu0
        %v1808 = vadd.f32 %v1686, %v1807
        %v1809 = vpop.f32.mrb[0].mxu0
        %v1810 = vpop.f32.mrb[0].mxu0
        %v1811 = vadd.f32 %v1686, %v1810
        %v1812 = vpop.f32.mrb[0].mxu0
        %1813 = vmatprep.mubr.bf16.mxu0 0
        %1814 = vmatmul.mubr.bf16.gmra.mrb[0].mxu0 %v1714
        %v1815 = vpop.f32.mrb[0].mxu0
        %v1816 = vadd.f32 %v1686, %v1815
        %v1817 = vpop.f32.mrb[0].mxu0
        %v1818 = vpop.f32.mrb[0].mxu0
        %v1819 = vadd.f32 %v1686, %v1818
        %v1820 = vpop.f32.mrb[0].mxu0
        %1821 = vmatprep.mubr.bf16.mxu0 0
        %1822 = vmatmul.mubr.bf16.gmra.mrb[0].mxu0 %v1717
        %v1823 = vpop.f32.mrb[0].mxu0
        %v1824 = vadd.f32 %v1686, %v1823
        %v1825 = vpop.f32.mrb[0].mxu0
        %v1826 = vpop.f32.mrb[0].mxu0
        %v1827 = vadd.f32 %v1686, %v1826
        %v1828 = vpop.f32.mrb[0].mxu0
        %1829 = vmatprep.mubr.bf16.mxu0 0
        %1830 = vmatmul.mubr.bf16.gmra.mrb[0].mxu0 %v1720
        %v1831 = vpop.f32.mrb[0].mxu0
        %v1832 = vadd.f32 %v1686, %v1831
        %v1833 = vpop.f32.mrb[0].mxu0
        %v1834 = vpop.f32.mrb[0].mxu0
        %v1835 = vadd.f32 %v1686, %v1834
        %v1836 = vpop.f32.mrb[0].mxu0
        %1837 = vmatprep.mubr.bf16.mxu0 0
        %1838 = vmatmul.mubr.bf16.gmra.mrb[0].mxu0 %v1723
        %v1839 = vpop.f32.mrb[0].mxu0
        %v1840 = vadd.f32 %v1686, %v1839
        %v1841 = vpop.f32.mrb[0].mxu0
        %v1842 = vpop.f32.mrb[0].mxu0
        %v1843 = vadd.f32 %v1686, %v1842
        %v1844 = vpop.f32.mrb[0].mxu0
        %1845 = vmatprep.mubr.bf16.mxu0 0
        %1846 = vmatmul.mubr.bf16.gmra.mrb[0].mxu0 %v1726
        %v1847 = vpop.f32.mrb[0].mxu0
        %v1848 = vadd.f32 %v1686, %v1847
        %v1849 = vpop.f32.mrb[0].mxu0
        %v1850 = vpop.f32.mrb[0].mxu0
        %v1851 = vadd.f32 %v1686, %v1850
        %v1852 = vpop.f32.mrb[0].mxu0
        %1853 = vmatprep.mubr.bf16.mxu0 0
        %1854 = vmatmul.mubr.bf16.gmra.mrb[0].mxu0 %v1729
        %v1855 = vpop.f32.mrb[0].mxu0
        %v1856 = vadd.f32 %v1686, %v1855
        %v1857 = vpop.f32.mrb[0].mxu0
        %v1858 = vpop.f32.mrb[0].mxu0
        %v1859 = vadd.f32 %v1686, %v1858
        %v1860 = vpop.f32.mrb[0].mxu0
        %1861 = vmatprep.mubr.bf16.mxu0 0
        %1862 = vmatmul.mubr.bf16.gmra.mrb[0].mxu0 %v1732
        %v1863 = vpop.f32.mrb[0].mxu0
        %v1864 = vadd.f32 %v1686, %v1863
        %v1865 = vpop.f32.mrb[0].mxu0
        %v1866 = vpop.f32.mrb[0].mxu0
        %v1867 = vadd.f32 %v1686, %v1866
        %v1868 = vpop.f32.mrb[0].mxu0
        %1869 = vmatprep.mubr.bf16.mxu0 0
        %1870 = vmatmul.mubr.bf16.gmra.mrb[0].mxu0 %v1735
        %v1871 = vpop.f32.mrb[0].mxu0
        %v1872 = vadd.f32 %v1686, %v1871
        %v1873 = vpop.f32.mrb[0].mxu0
        %v1874 = vpop.f32.mrb[0].mxu0
        %v1875 = vadd.f32 %v1686, %v1874
        %v1876 = vpop.f32.mrb[0].mxu0
        %1877 = vmatprep.mubr.bf16.mxu0 0
        %1878 = vmatmul.mubr.bf16.gmra.mrb[0].mxu0 %v1738
        %v1879 = vpop.f32.mrb[0].mxu0
        %v1880 = vadd.f32 %v1686, %v1879
        %v1881 = vpop.f32.mrb[0].mxu0
        %v1882 = vpop.f32.mrb[0].mxu0
        %v1883 = vadd.f32 %v1686, %v1882
        %v1884 = vpop.f32.mrb[0].mxu0
        %1885 = vmatprep.mubr.bf16.mxu0 0
        %1886 = vmatmul.mubr.bf16.gmra.mrb[0].mxu0 %v1741
        %v1887 = vpop.f32.mrb[0].mxu0
        %v1888 = vadd.f32 %v1686, %v1887
        %v1889 = vpop.f32.mrb[0].mxu0
        %v1890 = vpop.f32.mrb[0].mxu0
        %v1891 = vadd.f32 %v1686, %v1890
        %v1892 = vpop.f32.mrb[0].mxu0
        %1893 = vmatprep.mubr.bf16.mxu0 0
        %1894 = vmatmul.mubr.bf16.gmra.mrb[0].mxu0 %v1744
        %v1895 = vpop.f32.mrb[0].mxu0
        %v1896 = vadd.f32 %v1686, %v1895
        %v1897 = vpop.f32.mrb[0].mxu0
        %v1898 = vpop.f32.mrb[0].mxu0
        %v1899 = vadd.f32 %v1686, %v1898
        %v1900 = vpop.f32.mrb[0].mxu0
        %1901 = vmatprep.mubr.bf16.mxu0 0
        %1902 = vmatmul.mubr.bf16.gmra.mrb[0].mxu0 %v1747
        %v1903 = vpop.f32.mrb[0].mxu0
        %v1904 = vadd.f32 %v1686, %v1903
        %v1905 = vpop.f32.mrb[0].mxu0
        %v1906 = vpop.f32.mrb[0].mxu0
        %v1907 = vadd.f32 %v1686, %v1906
        %v1908 = vpop.f32.mrb[0].mxu0
        %1909 = vdwg.mxu0
        %s1910 = sld [smem:[#allocation3 + $0x3]]
        %vm1911 = vcmp.ge.f32.partialorder %v1784, 0.0
        %vm1912 = vcmp.ge.f32.partialorder %v1787, 0.0
        %vm1913 = vcmp.ge.f32.partialorder %v1792, 0.0
        %vm1914 = vcmp.ge.f32.partialorder %v1795, 0.0
        %vm1915 = vcmp.ge.f32.partialorder %v1800, 0.0
        %vm1916 = vcmp.ge.f32.partialorder %v1803, 0.0
        %vm1917 = vcmp.ge.f32.partialorder %v1808, 0.0
        %vm1918 = vcmp.ge.f32.partialorder %v1811, 0.0
        %vm1919 = vcmp.ge.f32.partialorder %v1816, 0.0
        %vm1920 = vcmp.ge.f32.partialorder %v1819, 0.0
        %vm1921 = vcmp.ge.f32.partialorder %v1824, 0.0
        %vm1922 = vcmp.ge.f32.partialorder %v1827, 0.0
        %vm1923 = vcmp.ge.f32.partialorder %v1832, 0.0
        %vm1924 = vcmp.ge.f32.partialorder %v1835, 0.0
        %vm1925 = vcmp.ge.f32.partialorder %v1840, 0.0
        %vm1926 = vcmp.ge.f32.partialorder %v1843, 0.0
        %vm1927 = vcmp.ge.f32.partialorder %v1848, 0.0
        %vm1928 = vcmp.ge.f32.partialorder %v1851, 0.0
        %vm1929 = vcmp.ge.f32.partialorder %v1856, 0.0
        %vm1930 = vcmp.ge.f32.partialorder %v1859, 0.0
        %vm1931 = vcmp.ge.f32.partialorder %v1864, 0.0
        %vm1932 = vcmp.ge.f32.partialorder %v1867, 0.0
        %vm1933 = vcmp.ge.f32.partialorder %v1872, 0.0
        %vm1934 = vcmp.ge.f32.partialorder %v1875, 0.0
        %vm1935 = vcmp.ge.f32.partialorder %v1880, 0.0
        %vm1936 = vcmp.ge.f32.partialorder %v1883, 0.0
        %vm1937 = vcmp.ge.f32.partialorder %v1888, 0.0
        %vm1938 = vcmp.ge.f32.partialorder %v1891, 0.0
        %vm1939 = vcmp.ge.f32.partialorder %v1896, 0.0
        %vm1940 = vcmp.ge.f32.partialorder %v1899, 0.0
        %vm1941 = vcmp.ge.f32.partialorder %v1904, 0.0
        %vm1942 = vcmp.ge.f32.partialorder %v1907, 0.0
        %v1943 = vstv %s1910
        %v1944 = vmul.f32 %v1943, %v1784
        %v1945 = vmul.f32 %v1943, %v1787
        %v1946 = vmul.f32 %v1943, %v1792
        %v1947 = vmul.f32 %v1943, %v1795
        %v1948 = vmul.f32 %v1943, %v1800
        %v1949 = vmul.f32 %v1943, %v1803
        %v1950 = vmul.f32 %v1943, %v1808
        %v1951 = vmul.f32 %v1943, %v1811
        %v1952 = vmul.f32 %v1943, %v1816
        %v1953 = vmul.f32 %v1943, %v1819
        %v1954 = vmul.f32 %v1943, %v1824
        %v1955 = vmul.f32 %v1943, %v1827
        %v1956 = vmul.f32 %v1943, %v1832
        %v1957 = vmul.f32 %v1943, %v1835
        %v1958 = vmul.f32 %v1943, %v1840
        %v1959 = vmul.f32 %v1943, %v1843
        %v1960 = vmul.f32 %v1943, %v1848
        %v1961 = vmul.f32 %v1943, %v1851
        %v1962 = vmul.f32 %v1943, %v1856
        %v1963 = vmul.f32 %v1943, %v1859
        %v1964 = vmul.f32 %v1943, %v1864
        %v1965 = vmul.f32 %v1943, %v1867
        %v1966 = vmul.f32 %v1943, %v1872
        %v1967 = vmul.f32 %v1943, %v1875
        %v1968 = vmul.f32 %v1943, %v1880
        %v1969 = vmul.f32 %v1943, %v1883
        %v1970 = vmul.f32 %v1943, %v1888
        %v1971 = vmul.f32 %v1943, %v1891
        %v1972 = vmul.f32 %v1943, %v1896
        %v1973 = vmul.f32 %v1943, %v1899
        %v1974 = vmul.f32 %v1943, %v1904
        %v1975 = vmul.f32 %v1943, %v1907
        %v1976 = vsel %vm1911, %v1784, %v1944
        %v1977 = vsel %vm1912, %v1787, %v1945
        %v1978 = vsel %vm1913, %v1792, %v1946
        %v1979 = vsel %vm1914, %v1795, %v1947
        %v1980 = vsel %vm1915, %v1800, %v1948
        %v1981 = vsel %vm1916, %v1803, %v1949
        %v1982 = vsel %vm1917, %v1808, %v1950
        %v1983 = vsel %vm1918, %v1811, %v1951
        %v1984 = vsel %vm1919, %v1816, %v1952
        %v1985 = vsel %vm1920, %v1819, %v1953
        %v1986 = vsel %vm1921, %v1824, %v1954
        %v1987 = vsel %vm1922, %v1827, %v1955
        %v1988 = vsel %vm1923, %v1832, %v1956
        %v1989 = vsel %vm1924, %v1835, %v1957
        %v1990 = vsel %vm1925, %v1840, %v1958
        %v1991 = vsel %vm1926, %v1843, %v1959
        %v1992 = vsel %vm1927, %v1848, %v1960
        %v1993 = vsel %vm1928, %v1851, %v1961
        %v1994 = vsel %vm1929, %v1856, %v1962
        %v1995 = vsel %vm1930, %v1859, %v1963
        %v1996 = vsel %vm1931, %v1864, %v1964
        %v1997 = vsel %vm1932, %v1867, %v1965
        %v1998 = vsel %vm1933, %v1872, %v1966
        %v1999 = vsel %vm1934, %v1875, %v1967
        %v2000 = vsel %vm1935, %v1880, %v1968
        %v2001 = vsel %vm1936, %v1883, %v1969
        %v2002 = vsel %vm1937, %v1888, %v1970
        %v2003 = vsel %vm1938, %v1891, %v1971
        %v2004 = vsel %vm1939, %v1896, %v1972
        %v2005 = vsel %vm1940, %v1899, %v1973
        %v2006 = vsel %vm1941, %v1904, %v1974
        %v2007 = vsel %vm1942, %v1907, %v1975
        %v2008 = vld [vmem:[%s9] sm:$0x1]
        %v2010 = vlaneseq
        %v2011 = vshrl.u32 %v2010, 7
        %v2012 = vsub.s32 0, %v2011
        %v2013 = vrot.slane %v2008, %v2012
        %v2015 = vmul.f32 %v1976, %v2013
        %v2016 = vmul.f32 %v1977, %v2013
        %v2017 = vmul.f32 %v1978, %v2013
        %v2018 = vmul.f32 %v1979, %v2013
        %v2019 = vmul.f32 %v1980, %v2013
        %v2020 = vmul.f32 %v1981, %v2013
        %v2021 = vmul.f32 %v1982, %v2013
        %v2022 = vmul.f32 %v1983, %v2013
        %v2023 = vmul.f32 %v1984, %v2013
        %v2024 = vmul.f32 %v1985, %v2013
        %v2025 = vmul.f32 %v1986, %v2013
        %v2026 = vmul.f32 %v1987, %v2013
        %v2027 = vmul.f32 %v1988, %v2013
        %v2028 = vmul.f32 %v1989, %v2013
        %v2029 = vmul.f32 %v1990, %v2013
        %v2030 = vmul.f32 %v1991, %v2013
        %v2031 = vmul.f32 %v1992, %v2013
        %v2032 = vmul.f32 %v1993, %v2013
        %v2033 = vmul.f32 %v1994, %v2013
        %v2034 = vmul.f32 %v1995, %v2013
        %v2035 = vmul.f32 %v1996, %v2013
        %v2036 = vmul.f32 %v1997, %v2013
        %v2037 = vmul.f32 %v1998, %v2013
        %v2038 = vmul.f32 %v1999, %v2013
        %v2039 = vmul.f32 %v2000, %v2013
        %v2040 = vmul.f32 %v2001, %v2013
        %v2041 = vmul.f32 %v2002, %v2013
        %v2042 = vmul.f32 %v2003, %v2013
        %v2043 = vmul.f32 %v2004, %v2013
        %v2044 = vmul.f32 %v2005, %v2013
        %v2045 = vmul.f32 %v2006, %v2013
        %v2046 = vmul.f32 %v2007, %v2013
        %vm2047 = vcmask 130048
        %v2048 = vsel %vm2047, %v2015, 0.0
        %2049 = vadd.xlane.f32.xlu0 %v2048
        %v2050 = vpop.xlane.xlu0 %2049
        %v2051 = vsel %vm2047, %v2016, 0.0
        %2052 = vadd.xlane.f32.xlu0 %v2051
        %v2053 = vpop.xlane.xlu0 %2052
        %v2054 = vsel %vm2047, %v2017, 0.0
        %2055 = vadd.xlane.f32.xlu0 %v2054
        %v2056 = vpop.xlane.xlu0 %2055
        %v2057 = vsel %vm2047, %v2018, 0.0
        %2058 = vadd.xlane.f32.xlu0 %v2057
        %v2059 = vpop.xlane.xlu0 %2058
        %v2060 = vsel %vm2047, %v2019, 0.0
        %2061 = vadd.xlane.f32.xlu0 %v2060
        %v2062 = vpop.xlane.xlu0 %2061
        %v2063 = vsel %vm2047, %v2020, 0.0
        %2064 = vadd.xlane.f32.xlu0 %v2063
        %v2065 = vpop.xlane.xlu0 %2064
        %v2066 = vsel %vm2047, %v2021, 0.0
        %2067 = vadd.xlane.f32.xlu0 %v2066
        %v2068 = vpop.xlane.xlu0 %2067
        %v2069 = vsel %vm2047, %v2022, 0.0
        %2070 = vadd.xlane.f32.xlu0 %v2069
        %v2071 = vpop.xlane.xlu0 %2070
        %v2072 = vsel %vm2047, %v2023, 0.0
        %2073 = vadd.xlane.f32.xlu0 %v2072
        %v2074 = vpop.xlane.xlu0 %2073
        %v2075 = vsel %vm2047, %v2024, 0.0
        %2076 = vadd.xlane.f32.xlu0 %v2075
        %v2077 = vpop.xlane.xlu0 %2076
        %v2078 = vsel %vm2047, %v2025, 0.0
        %2079 = vadd.xlane.f32.xlu0 %v2078
        %v2080 = vpop.xlane.xlu0 %2079
        %v2081 = vsel %vm2047, %v2026, 0.0
        %2082 = vadd.xlane.f32.xlu0 %v2081
        %v2083 = vpop.xlane.xlu0 %2082
        %v2084 = vsel %vm2047, %v2027, 0.0
        %2085 = vadd.xlane.f32.xlu0 %v2084
        %v2086 = vpop.xlane.xlu0 %2085
        %v2087 = vsel %vm2047, %v2028, 0.0
        %2088 = vadd.xlane.f32.xlu0 %v2087
        %v2089 = vpop.xlane.xlu0 %2088
        %v2090 = vsel %vm2047, %v2029, 0.0
        %2091 = vadd.xlane.f32.xlu0 %v2090
        %v2092 = vpop.xlane.xlu0 %2091
        %v2093 = vsel %vm2047, %v2030, 0.0
        %2094 = vadd.xlane.f32.xlu0 %v2093
        %v2095 = vpop.xlane.xlu0 %2094
        %v2096 = vsel %vm2047, %v2031, 0.0
        %2097 = vadd.xlane.f32.xlu0 %v2096
        %v2098 = vpop.xlane.xlu0 %2097
        %v2099 = vsel %vm2047, %v2032, 0.0
        %2100 = vadd.xlane.f32.xlu0 %v2099
        %v2101 = vpop.xlane.xlu0 %2100
        %v2102 = vsel %vm2047, %v2033, 0.0
        %2103 = vadd.xlane.f32.xlu0 %v2102
        %v2104 = vpop.xlane.xlu0 %2103
        %v2105 = vsel %vm2047, %v2034, 0.0
        %2106 = vadd.xlane.f32.xlu0 %v2105
        %v2107 = vpop.xlane.xlu0 %2106
        %v2108 = vsel %vm2047, %v2035, 0.0
        %2109 = vadd.xlane.f32.xlu0 %v2108
        %v2110 = vpop.xlane.xlu0 %2109
        %v2111 = vsel %vm2047, %v2036, 0.0
        %2112 = vadd.xlane.f32.xlu0 %v2111
        %v2113 = vpop.xlane.xlu0 %2112
        %v2114 = vsel %vm2047, %v2037, 0.0
        %2115 = vadd.xlane.f32.xlu0 %v2114
        %v2116 = vpop.xlane.xlu0 %2115
        %v2117 = vsel %vm2047, %v2038, 0.0
        %2118 = vadd.xlane.f32.xlu0 %v2117
        %v2119 = vpop.xlane.xlu0 %2118
        %v2120 = vsel %vm2047, %v2039, 0.0
        %2121 = vadd.xlane.f32.xlu0 %v2120
        %v2122 = vpop.xlane.xlu0 %2121
        %v2123 = vsel %vm2047, %v2040, 0.0
        %2124 = vadd.xlane.f32.xlu0 %v2123
        %v2125 = vpop.xlane.xlu0 %2124
        %v2126 = vsel %vm2047, %v2041, 0.0
        %2127 = vadd.xlane.f32.xlu0 %v2126
        %v2128 = vpop.xlane.xlu0 %2127
        %v2129 = vsel %vm2047, %v2042, 0.0
        %2130 = vadd.xlane.f32.xlu0 %v2129
        %v2131 = vpop.xlane.xlu0 %2130
        %v2132 = vsel %vm2047, %v2043, 0.0
        %2133 = vadd.xlane.f32.xlu0 %v2132
        %v2134 = vpop.xlane.xlu0 %2133
        %v2135 = vsel %vm2047, %v2044, 0.0
        %2136 = vadd.xlane.f32.xlu0 %v2135
        %v2137 = vpop.xlane.xlu0 %2136
        %v2138 = vsel %vm2047, %v2045, 0.0
        %2139 = vadd.xlane.f32.xlu0 %v2138
        %v2140 = vpop.xlane.xlu0 %2139
        %v2141 = vsel %vm2047, %v2046, 0.0
        %2142 = vadd.xlane.f32.xlu0 %v2141
        %v2143 = vpop.xlane.xlu0 %2142
        %v2144 = vld [vmem:[#allocation2] sm:$0x1]
        %v2146 = vlaneseq
        %v2147 = vshrl.u32 %v2146, 7
        %v2148 = vsub.s32 0, %v2147
        %v2149 = vrot.slane %v2144, %v2148
        %v2151 = vadd.f32 %v2050, %v2149
        %v2152 = vadd.f32 %v2053, %v2149
        %v2153 = vadd.f32 %v2056, %v2149
        %v2154 = vadd.f32 %v2059, %v2149
        %v2155 = vadd.f32 %v2062, %v2149
        %v2156 = vadd.f32 %v2065, %v2149
        %v2157 = vadd.f32 %v2068, %v2149
        %v2158 = vadd.f32 %v2071, %v2149
        %v2159 = vadd.f32 %v2074, %v2149
        %v2160 = vadd.f32 %v2077, %v2149
        %v2161 = vadd.f32 %v2080, %v2149
        %v2162 = vadd.f32 %v2083, %v2149
        %v2163 = vadd.f32 %v2086, %v2149
        %v2164 = vadd.f32 %v2089, %v2149
        %v2165 = vadd.f32 %v2092, %v2149
        %v2166 = vadd.f32 %v2095, %v2149
        %v2167 = vadd.f32 %v2098, %v2149
        %v2168 = vadd.f32 %v2101, %v2149
        %v2169 = vadd.f32 %v2104, %v2149
        %v2170 = vadd.f32 %v2107, %v2149
        %v2171 = vadd.f32 %v2110, %v2149
        %v2172 = vadd.f32 %v2113, %v2149
        %v2173 = vadd.f32 %v2116, %v2149
        %v2174 = vadd.f32 %v2119, %v2149
        %v2175 = vadd.f32 %v2122, %v2149
        %v2176 = vadd.f32 %v2125, %v2149
        %v2177 = vadd.f32 %v2128, %v2149
        %v2178 = vadd.f32 %v2131, %v2149
        %v2179 = vadd.f32 %v2134, %v2149
        %v2180 = vadd.f32 %v2137, %v2149
        %v2181 = vadd.f32 %v2140, %v2149
        %v2182 = vadd.f32 %v2143, %v2149
        %vm2183 = vcmask 7168
        %2184 = vst.msk [vmem:[%s434] sm:$0xff] %vm2183, %v2151
        %2185 = vst.msk [vmem:[%s434 + $0x8] sm:$0xff] %vm2183, %v2152
        %2186 = vst.msk [vmem:[%s434 + $0x10] sm:$0xff] %vm2183, %v2153
        %2187 = vst.msk [vmem:[%s434 + $0x18] sm:$0xff] %vm2183, %v2154
        %2188 = vst.msk [vmem:[%s434 + $0x20] sm:$0xff] %vm2183, %v2155
        %2189 = vst.msk [vmem:[%s434 + $0x28] sm:$0xff] %vm2183, %v2156
        %2190 = vst.msk [vmem:[%s434 + $0x30] sm:$0xff] %vm2183, %v2157
        %2191 = vst.msk [vmem:[%s434 + $0x38] sm:$0xff] %vm2183, %v2158
        %2192 = vst.msk [vmem:[%s434 + $0x40] sm:$0xff] %vm2183, %v2159
        %2193 = vst.msk [vmem:[%s434 + $0x48] sm:$0xff] %vm2183, %v2160
        %2194 = vst.msk [vmem:[%s434 + $0x50] sm:$0xff] %vm2183, %v2161
        %2195 = vst.msk [vmem:[%s434 + $0x58] sm:$0xff] %vm2183, %v2162
        %2196 = vst.msk [vmem:[%s434 + $0x60] sm:$0xff] %vm2183, %v2163
        %2197 = vst.msk [vmem:[%s434 + $0x68] sm:$0xff] %vm2183, %v2164
        %2198 = vst.msk [vmem:[%s434 + $0x70] sm:$0xff] %vm2183, %v2165
        %2199 = vst.msk [vmem:[%s434 + $0x78] sm:$0xff] %vm2183, %v2166
        %2200 = vst.msk [vmem:[%s434 + $0x80] sm:$0xff] %vm2183, %v2167
        %2201 = vst.msk [vmem:[%s434 + $0x88] sm:$0xff] %vm2183, %v2168
        %2202 = vst.msk [vmem:[%s434 + $0x90] sm:$0xff] %vm2183, %v2169
        %2203 = vst.msk [vmem:[%s434 + $0x98] sm:$0xff] %vm2183, %v2170
        %2204 = vst.msk [vmem:[%s434 + $0xa0] sm:$0xff] %vm2183, %v2171
        %2205 = vst.msk [vmem:[%s434 + $0xa8] sm:$0xff] %vm2183, %v2172
        %2206 = vst.msk [vmem:[%s434 + $0xb0] sm:$0xff] %vm2183, %v2173
        %2207 = vst.msk [vmem:[%s434 + $0xb8] sm:$0xff] %vm2183, %v2174
        %2208 = vst.msk [vmem:[%s434 + $0xc0] sm:$0xff] %vm2183, %v2175
        %2209 = vst.msk [vmem:[%s434 + $0xc8] sm:$0xff] %vm2183, %v2176
        %2210 = vst.msk [vmem:[%s434 + $0xd0] sm:$0xff] %vm2183, %v2177
        %2211 = vst.msk [vmem:[%s434 + $0xd8] sm:$0xff] %vm2183, %v2178
        %2212 = vst.msk [vmem:[%s434 + $0xe0] sm:$0xff] %vm2183, %v2179
        %2213 = vst.msk [vmem:[%s434 + $0xe8] sm:$0xff] %vm2183, %v2180
        %2214 = vst.msk [vmem:[%s434 + $0xf0] sm:$0xff] %vm2183, %v2181
        %2215 = vst.msk [vmem:[%s434 + $0xf8] sm:$0xff] %vm2183, %v2182
        %s2216 = smul.u32 32, %s26
        %p2217 = scmp.lt.s32.totalorder %s2216, 63
        %s2218 = scalar_select %p2217, %s2216, 63
        %s2219 = smul.addr %s2218, 8
        %s2220 = scalar_lea.vmem %s12, %s2219
        // Predicated region
        $region73: #{tpu_custom_call.1} parent=67 // pred_check
          %p2221 = pneg %p301
        $region74: #{tpu_custom_call.1} parent=67 // pred_check_branch
          %2223 = sbr.rel (%p2221) target = $region76
        $region75: #{tpu_custom_call.1} parent=67 // pred_region
          %s2224 = smul.u32 32, %s26
        $region76: #{tpu_custom_call.1} parent=67 // pred_fallthru
          _
      $region68: #{tpu_custom_call.1} parent=5 // pred_fallthru
        _
      %p2225 = scmp.le.s32.totalorder 2, %s21
      // Predicated region
      $region77: #{tpu_custom_call.1} parent=5 // pred_check
        %p2226 = pneg %p2225
      $region78: #{tpu_custom_call.1} parent=5 // pred_check_branch
        %2228 = sbr.rel (%p2226) target = $region80
      $region79: #{tpu_custom_call.1} parent=5 // pred_region
        %s2229 = ssub.s32 %s21, 2
        // Predicated region
        $region81: #{tpu_custom_call.1} parent=79 // pred_check
          %p2230 = pneg %p307
        $region82: #{tpu_custom_call.1} parent=79 // pred_check_branch
          %2232 = sbr.rel (%p2230) target = $region84
        $region83: #{tpu_custom_call.1} parent=79 // pred_region
          %s2233 = smul.u32 32, %s27
          %p2234 = scmp.lt.s32.totalorder %s2233, 63
          %s2235 = scalar_select %p2234, %s2233, 63
          %s2236 = smul.addr %s2235, 8
          %s2237 = scalar_lea.vmem %s12, %s2236
        $region84: #{tpu_custom_call.1} parent=79 // pred_fallthru
          _
      $region80: #{tpu_custom_call.1} parent=5 // pred_fallthru
        _
    $region6: #{tpu_custom_call.1} parent=1 // loop_footer
      %s25 = sadd.s32 1, %s21
    $region7: #{tpu_custom_call.1} parent=1 // loop_footer_branch
      %20 = sbr.rel target = $region3
    $region8: #{tpu_custom_call.1} parent=1 // loop_exit
      _
    %2238 = vsyncpa [#allocation4], 1
    %s2239 = scalar_lea.sflag [#allocation4], 1
    %2240 = vsyncpa %s2239, 1

</llo_original>
